<compile_context>
chip_gen: v6e
topology: v6e:2x2x1
jax: 0.10.0
libtpu: 0.0.40
codegen_flags: <defaults>
</compile_context>

<pallas_src>
import functools
import math

import jax
import jax.numpy as jnp
from jax import lax
from jax.experimental import pallas as pl
from jax.experimental.pallas import tpu as pltpu


def mha_kernel(q_ref, k_ref, v_ref,
               wq_ref, wk_ref, wv_ref, wfc_ref,
               gamma_ref, beta_ref,
               out_ref, *rest,
               n_head, eps, mxu_dtype, approx_recip):
    # rest = (attn_ref?, kh_scratch, vh_scratch)
    kh_ref, vh_ref = rest[-2], rest[-1]
    attn_ref = rest[0] if len(rest) == 3 else None

    i = pl.program_id(1)               # q-tile index ("arbitrary" axis)
    gamma = gamma_ref[...]             # (1, D) f32
    beta = beta_ref[...]               # (1, D) f32

    def layer_norm(x):                 # statistics always in f32 (VPU/EUP path)
        x = x.astype(jnp.float32)
        mu = jnp.mean(x, axis=-1, keepdims=True)
        var = jnp.mean((x - mu) ** 2, axis=-1, keepdims=True)
        return (x - mu) * lax.rsqrt(var + eps) * gamma + beta

    # ---- K/V side: LayerNorm + head-major projections, ONCE per batch ----
    @pl.when(i == 0)
    def _():
        kn = layer_norm(k_ref[0]).astype(mxu_dtype)        # (Lk, D)
        vn = layer_norm(v_ref[0]).astype(mxu_dtype)        # (Lk, D)
        for h in range(n_head):                            # static unroll
            kh_ref[h] = jnp.dot(kn, wk_ref[h],
                                preferred_element_type=jnp.float32
                                ).astype(kh_ref.dtype)     # (Lk, d_k)
            vh_ref[h] = jnp.dot(vn, wv_ref[h],
                                preferred_element_type=jnp.float32
                                ).astype(vh_ref.dtype)     # (Lk, d_v)

    # ---- Q side: per q-tile ----
    q_in = q_ref[0]                                        # (tq, D) residual
    qn = layer_norm(q_in).astype(mxu_dtype)
    # 1/sqrt(d_k) already folded into wq on the host; head-major projection
    # is H plain matmuls stacked along the (untiled) head axis.
    qh = jnp.stack(
        [jnp.dot(qn, wq_ref[h], preferred_element_type=jnp.float32
                 ).astype(mxu_dtype) for h in range(n_head)],
        axis=0)                                            # (H, tq, d_k)

    kh = kh_ref[...]                                       # (H, Lk, d_k)
    vh = vh_ref[...]                                       # (H, Lk, d_v)

    # Scores for all heads at once; the MXU handles the transposed K read.
    scores = jnp.einsum('hqd,hkd->hqk', qh, kh,
                        preferred_element_type=jnp.float32)  # (H, tq, Lk) f32

    # Softmax in f32; normalisation via reciprocal (EUP) + broadcast multiply.
    m = jnp.max(scores, axis=-1, keepdims=True)
    e = jnp.exp(scores - m)
    denom = jnp.sum(e, axis=-1, keepdims=True)
    probs = e * pl.reciprocal(denom, approx=approx_recip)    # (H, tq, Lk)

    if attn_ref is not None:
        attn_ref[0] = probs.astype(attn_ref.dtype)           # bf16 by default

    ctx = jnp.einsum('hqk,hkd->hqd', probs.astype(mxu_dtype), vh,
                     preferred_element_type=jnp.float32)     # (H, tq, d_v)

    # Output projection: head-batched matmul summed over heads
    # (mathematically identical to concat(heads) @ Wfc).
    # TODO(synk): a single fused contraction over (h, d_v) would use the MXU
    # contraction width better; kept head-batched for lowering safety.
    out_h = jnp.einsum('hqd,hdm->hqm', ctx.astype(mxu_dtype), wfc_ref[...],
                       preferred_element_type=jnp.float32)   # (H, tq, D)
    out_ref[0] = (jnp.sum(out_h, axis=0)
                  + q_in.astype(jnp.float32)).astype(out_ref.dtype)


def _pick_q_block(seq_len):
    """128 on v5e (128-wide MXU), 256 on v6e/v7x; must divide seq_len."""
    try:
        kind = jax.devices()[0].device_kind.lower()
    except Exception:
        kind = ""
    pref = 128 if "v5" in kind else 256
    if seq_len <= pref:
        return seq_len
    for cand in (pref, 256, 128, 64, 32, 16, 8):
        if cand <= pref and seq_len % cand == 0:
            return cand
    return seq_len


def multi_head_attention(q, k, v, wq_t, wk_t, wv_t, wfc_t, gamma, beta, *,
                         n_head, d_k, d_v, eps=1e-6,
                         mxu_dtype=jnp.bfloat16, approx_recip=True,
                         return_attn=True, attn_dtype=None,
                         stream_dtype=None, q_block=None,
                         vmem_limit_bytes=None):
    B, Lq, D = q.shape
    Lk = k.shape[1]

    if attn_dtype is None:
        attn_dtype = mxu_dtype          # bf16 attn writeback in fast mode
    if stream_dtype is not None:
        # Halves streamed-input HBM bytes; NOTE: the residual is then added
        # from the stream_dtype-rounded q (tiny deviation from the f32 module).
        q = q.astype(stream_dtype)
        k = k.astype(stream_dtype)
        v = v.astype(stream_dtype)

    if q_block is None:
        q_block = _pick_q_block(Lq)
    assert Lq % q_block == 0, "Lq must be divisible by q_block"
    nq = Lq // q_block

    # Head-major weights on the host; 1/sqrt(d_k) folded into wq in f32
    # before the (optional) bf16 cast.
    wq_h = (wq_t.astype(jnp.float32).reshape(D, n_head, d_k)
            * (1.0 / math.sqrt(d_k))).transpose(1, 0, 2).astype(mxu_dtype)
    wk_h = wk_t.reshape(D, n_head, d_k).transpose(1, 0, 2).astype(mxu_dtype)
    wv_h = wv_t.reshape(D, n_head, d_v).transpose(1, 0, 2).astype(mxu_dtype)
    wfc3 = wfc_t.reshape(n_head, d_v, D).astype(mxu_dtype)
    gamma = gamma.astype(jnp.float32)
    beta = beta.astype(jnp.float32)

    kernel = functools.partial(mha_kernel, n_head=n_head, eps=eps,
                               mxu_dtype=mxu_dtype, approx_recip=approx_recip)

    in_specs = [
        pl.BlockSpec((1, q_block, D), lambda b, i: (b, i, 0)),
        pl.BlockSpec((1, Lk, D), lambda b, i: (b, 0, 0)),
        pl.BlockSpec((1, Lk, D), lambda b, i: (b, 0, 0)),
        pl.BlockSpec((n_head, D, d_k), lambda b, i: (0, 0, 0)),
        pl.BlockSpec((n_head, D, d_k), lambda b, i: (0, 0, 0)),
        pl.BlockSpec((n_head, D, d_v), lambda b, i: (0, 0, 0)),
        pl.BlockSpec((n_head, d_v, D), lambda b, i: (0, 0, 0)),
        pl.BlockSpec((1, D), lambda b, i: (0, 0)),
        pl.BlockSpec((1, D), lambda b, i: (0, 0)),
    ]
    out_shape = [jax.ShapeDtypeStruct((B, Lq, D), jnp.float32)]
    out_specs = [pl.BlockSpec((1, q_block, D), lambda b, i: (b, i, 0))]
    if return_attn:
        out_shape.append(jax.ShapeDtypeStruct((B, n_head, Lq, Lk), attn_dtype))
        out_specs.append(
            pl.BlockSpec((1, n_head, q_block, Lk), lambda b, i: (b, 0, i, 0)))

    # Persistent head-major K/V activations (written once per batch).
    scratch_shapes = [
        pltpu.VMEM((n_head, Lk, d_k), mxu_dtype),
        pltpu.VMEM((n_head, Lk, d_v), mxu_dtype),
    ]

    act_bytes = jnp.dtype(q.dtype).itemsize
    w_bytes = jnp.dtype(mxu_dtype).itemsize
    if vmem_limit_bytes is None:
        need = 0
        need += 2 * q_block * D * act_bytes                      # q tile (dbl-buf)
        need += 2 * 2 * Lk * D * act_bytes                       # k, v blocks
        need += 2 * (2 * n_head * D * d_k + n_head * D * d_v
                     + n_head * d_v * D) * w_bytes               # weights
        need += 2 * q_block * D * 4                              # out tile
        if return_attn:
            need += 2 * n_head * q_block * Lk * jnp.dtype(attn_dtype).itemsize
        need += n_head * Lk * (d_k + d_v) * w_bytes              # K/V scratch
        need += 6 * n_head * q_block * Lk * 4                    # f32 temporaries
        vmem_limit_bytes = int(min(max(2 * need, 32 * 1024 * 1024),
                                   48 * 1024 * 1024))            # v7x-safe cap

    # Advisory cost estimate (K/V-side work counted once per batch, as run).
    flops = B * (2 * Lq * D * n_head * d_k                # Q projection
                 + 2 * Lk * D * n_head * d_k              # K projection (x1)
                 + 2 * Lk * D * n_head * d_v              # V projection (x1)
                 + 2 * n_head * Lq * Lk * (d_k + d_v)     # scores + ctx
                 + 2 * Lq * n_head * d_v * D)             # output projection
    transcendentals = B * (n_head * Lq * Lk + Lq + 2 * Lk)
    bytes_accessed = (int(q.size) * act_bytes + int(k.size) * act_bytes
                      + int(v.size) * act_bytes
                      + sum(int(a.size) * a.dtype.itemsize
                            for a in (wq_h, wk_h, wv_h, wfc3, gamma, beta))
                      + B * Lq * D * 4)
    if return_attn:
        bytes_accessed += B * n_head * Lq * Lk * jnp.dtype(attn_dtype).itemsize

    outs = pl.pallas_call(
        kernel,
        out_shape=tuple(out_shape),
        grid=(B, nq),
        in_specs=in_specs,
        out_specs=tuple(out_specs),
        scratch_shapes=scratch_shapes,
        compiler_params=pltpu.CompilerParams(
            # batch is parallel (megacore / v7x two-TC sharding when B >= 2);
            # q-tile axis must be "arbitrary" so the per-batch K/V scratch is
            # computed at i == 0 and reused in order by the later q tiles.
            dimension_semantics=("parallel", "arbitrary"),
            vmem_limit_bytes=vmem_limit_bytes),
        cost_estimate=pl.CostEstimate(flops=flops,
                                      transcendentals=transcendentals,
                                      bytes_accessed=int(bytes_accessed)),
    )(q, k, v, wq_h, wk_h, wv_h, wfc3, gamma, beta)

    if not isinstance(outs, (tuple, list)):
        outs = (outs,)
    if return_attn:
        return outs[0], outs[1]
    return outs[0], None


def reference_mha(q, k, v, wq_t, wk_t, wv_t, wfc_t, gamma, beta,
                  *, n_head, d_k, d_v):
    """Pure-JAX reference mirroring the PyTorch forward (eval mode, f32)."""
    def ln(x):
        mu = jnp.mean(x, axis=-1, keepdims=True)
        var = jnp.mean((x - mu) ** 2, axis=-1, keepdims=True)
        return (x - mu) / jnp.sqrt(var + 1e-6) * gamma[0] + beta[0]

    B, Lq, D = q.shape
    Lk = k.shape[1]
    residual = q
    qn, kn, vn = ln(q), ln(k), ln(v)
    qp = (qn @ wq_t).reshape(B, Lq, n_head, d_k).transpose(0, 2, 1, 3)
    kp = (kn @ wk_t).reshape(B, Lk, n_head, d_k).transpose(0, 2, 1, 3)
    vp = (vn @ wv_t).reshape(B, Lk, n_head, d_v).transpose(0, 2, 1, 3)
    scores = jnp.einsum("bhqd,bhkd->bhqk", qp / (d_k ** 0.5), kp)
    attn = jax.nn.softmax(scores, axis=-1)
    ctx = jnp.einsum("bhqk,bhkd->bhqd", attn, vp)
    ctx = ctx.transpose(0, 2, 1, 3).reshape(B, Lq, n_head * d_v)
    out = ctx @ wfc_t + residual
    return out, attn


if __name__ == "__main__":
    # Small config consistent with the module: n_head=4, d_model=32, d_k=d_v=8
    B, L, D = 2, 8, 32
    n_head, d_k, d_v = 4, 8, 8

    key = jax.random.PRNGKey(0)
    kq, kk, kv, kwq, kwk, kwv, kwf = jax.random.split(key, 7)

    q = jax.random.normal(kq, (B, L, D), dtype=jnp.float32)
    k = jax.random.normal(kk, (B, L, D), dtype=jnp.float32)
    v = jax.random.normal(kv, (B, L, D), dtype=jnp.float32)

    # Linear weights (PyTorch stores (out, in); we pass transposed (in, out)).
    wq_t = jax.random.normal(kwq, (D, n_head * d_k), dtype=jnp.float32) * 0.05
    wk_t = jax.random.normal(kwk, (D, n_head * d_k), dtype=jnp.float32) * 0.05
    wv_t = jax.random.normal(kwv, (D, n_head * d_v), dtype=jnp.float32) * 0.05
    wfc_t = jax.random.normal(kwf, (n_head * d_v, D), dtype=jnp.float32) * 0.05
    gamma = jnp.ones((1, D), dtype=jnp.float32)
    beta = jnp.zeros((1, D), dtype=jnp.float32)

    out_ref, attn_ref = reference_mha(
        q, k, v, wq_t, wk_t, wv_t, wfc_t, gamma, beta,
        n_head=n_head, d_k=d_k, d_v=d_v)

    # 1) Exact path (f32 MXU operands, exact reciprocal, f32 attn): tight check.
    out32, attn32 = multi_head_attention(
        q, k, v, wq_t, wk_t, wv_t, wfc_t, gamma, beta,
        n_head=n_head, d_k=d_k, d_v=d_v,
        mxu_dtype=jnp.float32, approx_recip=False)
    out32 = jax.block_until_ready(out32)
    attn32 = jax.block_until_ready(attn32)
    assert out32.shape == (B, L, D)
    assert attn32.shape == (B, n_head, L, L)
    assert jnp.allclose(out32, out_ref, atol=1e-4, rtol=1e-4)
    assert jnp.allclose(attn32, attn_ref, atol=1e-5, rtol=1e-5)

    # 2) Fast path (default: bf16 MXU operands, approx reciprocal, bf16 attn).
    out_bf, attn_bf = multi_head_attention(
        q, k, v, wq_t, wk_t, wv_t, wfc_t, gamma, beta,
        n_head=n_head, d_k=d_k, d_v=d_v)
    out_bf = jax.block_until_ready(out_bf)
    attn_bf = jax.block_until_ready(attn_bf)
    assert jnp.allclose(out_bf, out_ref, atol=3e-2, rtol=3e-2)
    assert jnp.allclose(attn_bf.astype(jnp.float32), attn_ref, atol=1e-2)

    # 3) Fast path, bf16-streamed activations, no attention writeback.
    out_na, attn_na = multi_head_attention(
        q, k, v, wq_t, wk_t, wv_t, wfc_t, gamma, beta,
        n_head=n_head, d_k=d_k, d_v=d_v,
        return_attn=False, stream_dtype=jnp.bfloat16)
    out_na = jax.block_until_ready(out_na)
    assert attn_na is None
    assert jnp.allclose(out_na, out_ref, atol=3e-2, rtol=3e-2)

    print("KERNEL_OK")
</pallas_src>

<mosaic_0001>
module attributes {stable_mosaic.version = 11 : i64} {
  func.func @mha_kernel(%arg0: i32, %arg1: i32, %arg2: memref<1x8x32xf32, #tpu.memory_space<vmem>>, %arg3: memref<1x8x32xf32, #tpu.memory_space<vmem>>, %arg4: memref<1x8x32xf32, #tpu.memory_space<vmem>>, %arg5: memref<4x32x8xf32, #tpu.memory_space<vmem>>, %arg6: memref<4x32x8xf32, #tpu.memory_space<vmem>>, %arg7: memref<4x32x8xf32, #tpu.memory_space<vmem>>, %arg8: memref<4x8x32xf32, #tpu.memory_space<vmem>>, %arg9: memref<1x32xf32, #tpu.memory_space<vmem>>, %arg10: memref<1x32xf32, #tpu.memory_space<vmem>>, %arg11: memref<1x8x32xf32, #tpu.memory_space<vmem>>, %arg12: memref<1x4x8x8xf32, #tpu.memory_space<vmem>>, %arg13: memref<4x8x8xf32, #tpu.memory_space<vmem>>, %arg14: memref<4x8x8xf32, #tpu.memory_space<vmem>>) attributes {dimension_semantics = [#tpu.dimension_semantics<parallel>, #tpu.dimension_semantics<arbitrary>], iteration_bounds = array<i64: 2, 1>, scalar_prefetch = 0 : i64, scratch_operands = 2 : i64, tpu.core_type = #tpu.core_type<tc>, window_params = [{transform_indices = @transform_0, window_bounds = array<i64: 1, 8, 32>}, {transform_indices = @transform_1, window_bounds = array<i64: 1, 8, 32>}, {transform_indices = @transform_2, window_bounds = array<i64: 1, 8, 32>}, {pipeline_mode = #tpu.pipeline_mode<synchronous>, transform_indices = @transform_3, window_bounds = array<i64: 4, 32, 8>}, {pipeline_mode = #tpu.pipeline_mode<synchronous>, transform_indices = @transform_4, window_bounds = array<i64: 4, 32, 8>}, {pipeline_mode = #tpu.pipeline_mode<synchronous>, transform_indices = @transform_5, window_bounds = array<i64: 4, 32, 8>}, {pipeline_mode = #tpu.pipeline_mode<synchronous>, transform_indices = @transform_6, window_bounds = array<i64: 4, 8, 32>}, {pipeline_mode = #tpu.pipeline_mode<synchronous>, transform_indices = @transform_7, window_bounds = array<i64: 1, 32>}, {pipeline_mode = #tpu.pipeline_mode<synchronous>, transform_indices = @transform_8, window_bounds = array<i64: 1, 32>}, {transform_indices = @transform_9, window_bounds = array<i64: 1, 8, 32>}, {transform_indices = @transform_10, window_bounds = array<i64: 1, 4, 8, 8>}]} {
    %c0 = arith.constant 0 : index
    %c0_0 = arith.constant 0 : index
    %0 = vector.load %arg9[%c0, %c0_0] : memref<1x32xf32, #tpu.memory_space<vmem>>, vector<1x32xf32>
    %c0_1 = arith.constant 0 : index
    %c0_2 = arith.constant 0 : index
    %1 = vector.load %arg10[%c0_1, %c0_2] : memref<1x32xf32, #tpu.memory_space<vmem>>, vector<1x32xf32>
    %c0_i32 = arith.constant 0 : i32
    %2 = arith.cmpi eq, %arg1, %c0_i32 : i32
    %3 = arith.extui %2 : i1 to i32
    %c0_i32_3 = arith.constant 0 : i32
    %4 = arith.cmpi ne, %3, %c0_i32_3 : i32
    scf.if %4 {
      %c0_46 = arith.constant 0 : index
      %c0_47 = arith.constant 0 : index
      %c0_48 = arith.constant 0 : index
      %70 = vector.load %arg3[%c0_46, %c0_47, %c0_48] : memref<1x8x32xf32, #tpu.memory_space<vmem>>, vector<1x8x32xf32>
      %71 = vector.shape_cast %70 : vector<1x8x32xf32> to vector<8x32xf32>
      %cst_49 = arith.constant dense<0.000000e+00> : vector<8xf32>
      %72 = vector.multi_reduction <add>, %71, %cst_49 [1] : vector<8x32xf32> to vector<8xf32>
      %73 = vector.shape_cast %72 : vector<8xf32> to vector<8x1xf32>
      %cst_50 = arith.constant 3.200000e+01 : f32
      %74 = vector.broadcast %cst_50 : f32 to vector<8x1xf32>
      %75 = arith.divf %73, %74 : vector<8x1xf32>
      %76 = vector.broadcast %75 : vector<8x1xf32> to vector<8x32xf32>
      %77 = arith.subf %71, %76 : vector<8x32xf32>
      %78 = arith.mulf %77, %77 : vector<8x32xf32>
      %cst_51 = arith.constant dense<0.000000e+00> : vector<8xf32>
      %79 = vector.multi_reduction <add>, %78, %cst_51 [1] : vector<8x32xf32> to vector<8xf32>
      %80 = vector.shape_cast %79 : vector<8xf32> to vector<8x1xf32>
      %cst_52 = arith.constant 3.200000e+01 : f32
      %81 = vector.broadcast %cst_52 : f32 to vector<8x1xf32>
      %82 = arith.divf %80, %81 : vector<8x1xf32>
      %83 = vector.broadcast %75 : vector<8x1xf32> to vector<8x32xf32>
      %84 = arith.subf %71, %83 : vector<8x32xf32>
      %cst_53 = arith.constant 9.99999997E-7 : f32
      %85 = vector.broadcast %cst_53 : f32 to vector<8x1xf32>
      %86 = arith.addf %82, %85 : vector<8x1xf32>
      %87 = math.rsqrt %86 : vector<8x1xf32>
      %88 = vector.broadcast %87 : vector<8x1xf32> to vector<8x32xf32>
      %89 = arith.mulf %84, %88 : vector<8x32xf32>
      %90 = vector.broadcast %0 : vector<1x32xf32> to vector<8x32xf32>
      %91 = arith.mulf %89, %90 : vector<8x32xf32>
      %92 = vector.broadcast %1 : vector<1x32xf32> to vector<8x32xf32>
      %93 = arith.addf %91, %92 : vector<8x32xf32>
      %c0_54 = arith.constant 0 : index
      %c0_55 = arith.constant 0 : index
      %c0_56 = arith.constant 0 : index
      %94 = vector.load %arg4[%c0_54, %c0_55, %c0_56] : memref<1x8x32xf32, #tpu.memory_space<vmem>>, vector<1x8x32xf32>
      %95 = vector.shape_cast %94 : vector<1x8x32xf32> to vector<8x32xf32>
      %cst_57 = arith.constant dense<0.000000e+00> : vector<8xf32>
      %96 = vector.multi_reduction <add>, %95, %cst_57 [1] : vector<8x32xf32> to vector<8xf32>
      %97 = vector.shape_cast %96 : vector<8xf32> to vector<8x1xf32>
      %cst_58 = arith.constant 3.200000e+01 : f32
      %98 = vector.broadcast %cst_58 : f32 to vector<8x1xf32>
      %99 = arith.divf %97, %98 : vector<8x1xf32>
      %100 = vector.broadcast %99 : vector<8x1xf32> to vector<8x32xf32>
      %101 = arith.subf %95, %100 : vector<8x32xf32>
      %102 = arith.mulf %101, %101 : vector<8x32xf32>
      %cst_59 = arith.constant dense<0.000000e+00> : vector<8xf32>
      %103 = vector.multi_reduction <add>, %102, %cst_59 [1] : vector<8x32xf32> to vector<8xf32>
      %104 = vector.shape_cast %103 : vector<8xf32> to vector<8x1xf32>
      %cst_60 = arith.constant 3.200000e+01 : f32
      %105 = vector.broadcast %cst_60 : f32 to vector<8x1xf32>
      %106 = arith.divf %104, %105 : vector<8x1xf32>
      %107 = vector.broadcast %99 : vector<8x1xf32> to vector<8x32xf32>
      %108 = arith.subf %95, %107 : vector<8x32xf32>
      %cst_61 = arith.constant 9.99999997E-7 : f32
      %109 = vector.broadcast %cst_61 : f32 to vector<8x1xf32>
      %110 = arith.addf %106, %109 : vector<8x1xf32>
      %111 = math.rsqrt %110 : vector<8x1xf32>
      %112 = vector.broadcast %111 : vector<8x1xf32> to vector<8x32xf32>
      %113 = arith.mulf %108, %112 : vector<8x32xf32>
      %114 = vector.broadcast %0 : vector<1x32xf32> to vector<8x32xf32>
      %115 = arith.mulf %113, %114 : vector<8x32xf32>
      %116 = vector.broadcast %1 : vector<1x32xf32> to vector<8x32xf32>
      %117 = arith.addf %115, %116 : vector<8x32xf32>
      %c0_62 = arith.constant 0 : index
      %c0_63 = arith.constant 0 : index
      %c0_64 = arith.constant 0 : index
      %118 = vector.load %arg6[%c0_62, %c0_63, %c0_64] : memref<4x32x8xf32, #tpu.memory_space<vmem>>, vector<1x32x8xf32>
      %119 = vector.shape_cast %118 : vector<1x32x8xf32> to vector<32x8xf32>
      %cst_65 = arith.constant dense<0.000000e+00> : vector<8x8xf32>
      %120 = tpu.matmul %93, %119, %cst_65 {dimension_numbers = #tpu.dot_dimension_numbers<[1], [0], [0], [1], [0, 0, 1, 1], [], []>} : vector<8x32xf32>, vector<32x8xf32>, vector<8x8xf32> -> vector<8x8xf32>
      %c0_66 = arith.constant 0 : index
      %c0_67 = arith.constant 0 : index
      %c0_68 = arith.constant 0 : index
      %121 = vector.load %arg13[%c0_66, %c0_67, %c0_68] : memref<4x8x8xf32, #tpu.memory_space<vmem>>, vector<1x8x8xf32>
      %122 = vector.shape_cast %121 : vector<1x8x8xf32> to vector<8x8xf32>
      %123 = vector.shape_cast %120 : vector<8x8xf32> to vector<1x8x8xf32>
      tpu.vector_store %arg13[%c0_66, %c0_67, %c0_68], %123 {strides = array<i32>} : memref<4x8x8xf32, #tpu.memory_space<vmem>>, vector<1x8x8xf32>,
      %c0_69 = arith.constant 0 : index
      %c0_70 = arith.constant 0 : index
      %c0_71 = arith.constant 0 : index
      %124 = vector.load %arg7[%c0_69, %c0_70, %c0_71] : memref<4x32x8xf32, #tpu.memory_space<vmem>>, vector<1x32x8xf32>
      %125 = vector.shape_cast %124 : vector<1x32x8xf32> to vector<32x8xf32>
      %cst_72 = arith.constant dense<0.000000e+00> : vector<8x8xf32>
      %126 = tpu.matmul %117, %125, %cst_72 {dimension_numbers = #tpu.dot_dimension_numbers<[1], [0], [0], [1], [0, 0, 1, 1], [], []>} : vector<8x32xf32>, vector<32x8xf32>, vector<8x8xf32> -> vector<8x8xf32>
      %c0_73 = arith.constant 0 : index
      %c0_74 = arith.constant 0 : index
      %c0_75 = arith.constant 0 : index
      %127 = vector.load %arg14[%c0_73, %c0_74, %c0_75] : memref<4x8x8xf32, #tpu.memory_space<vmem>>, vector<1x8x8xf32>
      %128 = vector.shape_cast %127 : vector<1x8x8xf32> to vector<8x8xf32>
      %129 = vector.shape_cast %126 : vector<8x8xf32> to vector<1x8x8xf32>
      tpu.vector_store %arg14[%c0_73, %c0_74, %c0_75], %129 {strides = array<i32>} : memref<4x8x8xf32, #tpu.memory_space<vmem>>, vector<1x8x8xf32>,
      %c1_76 = arith.constant 1 : index
      %c0_77 = arith.constant 0 : index
      %c0_78 = arith.constant 0 : index
      %130 = vector.load %arg6[%c1_76, %c0_77, %c0_78] : memref<4x32x8xf32, #tpu.memory_space<vmem>>, vector<1x32x8xf32>
      %131 = vector.shape_cast %130 : vector<1x32x8xf32> to vector<32x8xf32>
      %cst_79 = arith.constant dense<0.000000e+00> : vector<8x8xf32>
      %132 = tpu.matmul %93, %131, %cst_79 {dimension_numbers = #tpu.dot_dimension_numbers<[1], [0], [0], [1], [0, 0, 1, 1], [], []>} : vector<8x32xf32>, vector<32x8xf32>, vector<8x8xf32> -> vector<8x8xf32>
      %c1_80 = arith.constant 1 : index
      %c0_81 = arith.constant 0 : index
      %c0_82 = arith.constant 0 : index
      %133 = vector.load %arg13[%c1_80, %c0_81, %c0_82] : memref<4x8x8xf32, #tpu.memory_space<vmem>>, vector<1x8x8xf32>
      %134 = vector.shape_cast %133 : vector<1x8x8xf32> to vector<8x8xf32>
      %135 = vector.shape_cast %132 : vector<8x8xf32> to vector<1x8x8xf32>
      tpu.vector_store %arg13[%c1_80, %c0_81, %c0_82], %135 {strides = array<i32>} : memref<4x8x8xf32, #tpu.memory_space<vmem>>, vector<1x8x8xf32>,
      %c1_83 = arith.constant 1 : index
      %c0_84 = arith.constant 0 : index
      %c0_85 = arith.constant 0 : index
      %136 = vector.load %arg7[%c1_83, %c0_84, %c0_85] : memref<4x32x8xf32, #tpu.memory_space<vmem>>, vector<1x32x8xf32>
      %137 = vector.shape_cast %136 : vector<1x32x8xf32> to vector<32x8xf32>
      %cst_86 = arith.constant dense<0.000000e+00> : vector<8x8xf32>
      %138 = tpu.matmul %117, %137, %cst_86 {dimension_numbers = #tpu.dot_dimension_numbers<[1], [0], [0], [1], [0, 0, 1, 1], [], []>} : vector<8x32xf32>, vector<32x8xf32>, vector<8x8xf32> -> vector<8x8xf32>
      %c1_87 = arith.constant 1 : index
      %c0_88 = arith.constant 0 : index
      %c0_89 = arith.constant 0 : index
      %139 = vector.load %arg14[%c1_87, %c0_88, %c0_89] : memref<4x8x8xf32, #tpu.memory_space<vmem>>, vector<1x8x8xf32>
      %140 = vector.shape_cast %139 : vector<1x8x8xf32> to vector<8x8xf32>
      %141 = vector.shape_cast %138 : vector<8x8xf32> to vector<1x8x8xf32>
      tpu.vector_store %arg14[%c1_87, %c0_88, %c0_89], %141 {strides = array<i32>} : memref<4x8x8xf32, #tpu.memory_space<vmem>>, vector<1x8x8xf32>,
      %c2_90 = arith.constant 2 : index
      %c0_91 = arith.constant 0 : index
      %c0_92 = arith.constant 0 : index
      %142 = vector.load %arg6[%c2_90, %c0_91, %c0_92] : memref<4x32x8xf32, #tpu.memory_space<vmem>>, vector<1x32x8xf32>
      %143 = vector.shape_cast %142 : vector<1x32x8xf32> to vector<32x8xf32>
      %cst_93 = arith.constant dense<0.000000e+00> : vector<8x8xf32>
      %144 = tpu.matmul %93, %143, %cst_93 {dimension_numbers = #tpu.dot_dimension_numbers<[1], [0], [0], [1], [0, 0, 1, 1], [], []>} : vector<8x32xf32>, vector<32x8xf32>, vector<8x8xf32> -> vector<8x8xf32>
      %c2_94 = arith.constant 2 : index
      %c0_95 = arith.constant 0 : index
      %c0_96 = arith.constant 0 : index
      %145 = vector.load %arg13[%c2_94, %c0_95, %c0_96] : memref<4x8x8xf32, #tpu.memory_space<vmem>>, vector<1x8x8xf32>
      %146 = vector.shape_cast %145 : vector<1x8x8xf32> to vector<8x8xf32>
      %147 = vector.shape_cast %144 : vector<8x8xf32> to vector<1x8x8xf32>
      tpu.vector_store %arg13[%c2_94, %c0_95, %c0_96], %147 {strides = array<i32>} : memref<4x8x8xf32, #tpu.memory_space<vmem>>, vector<1x8x8xf32>,
      %c2_97 = arith.constant 2 : index
      %c0_98 = arith.constant 0 : index
      %c0_99 = arith.constant 0 : index
      %148 = vector.load %arg7[%c2_97, %c0_98, %c0_99] : memref<4x32x8xf32, #tpu.memory_space<vmem>>, vector<1x32x8xf32>
      %149 = vector.shape_cast %148 : vector<1x32x8xf32> to vector<32x8xf32>
      %cst_100 = arith.constant dense<0.000000e+00> : vector<8x8xf32>
      %150 = tpu.matmul %117, %149, %cst_100 {dimension_numbers = #tpu.dot_dimension_numbers<[1], [0], [0], [1], [0, 0, 1, 1], [], []>} : vector<8x32xf32>, vector<32x8xf32>, vector<8x8xf32> -> vector<8x8xf32>
      %c2_101 = arith.constant 2 : index
      %c0_102 = arith.constant 0 : index
      %c0_103 = arith.constant 0 : index
      %151 = vector.load %arg14[%c2_101, %c0_102, %c0_103] : memref<4x8x8xf32, #tpu.memory_space<vmem>>, vector<1x8x8xf32>
      %152 = vector.shape_cast %151 : vector<1x8x8xf32> to vector<8x8xf32>
      %153 = vector.shape_cast %150 : vector<8x8xf32> to vector<1x8x8xf32>
      tpu.vector_store %arg14[%c2_101, %c0_102, %c0_103], %153 {strides = array<i32>} : memref<4x8x8xf32, #tpu.memory_space<vmem>>, vector<1x8x8xf32>,
      %c3_104 = arith.constant 3 : index
      %c0_105 = arith.constant 0 : index
      %c0_106 = arith.constant 0 : index
      %154 = vector.load %arg6[%c3_104, %c0_105, %c0_106] : memref<4x32x8xf32, #tpu.memory_space<vmem>>, vector<1x32x8xf32>
      %155 = vector.shape_cast %154 : vector<1x32x8xf32> to vector<32x8xf32>
      %cst_107 = arith.constant dense<0.000000e+00> : vector<8x8xf32>
      %156 = tpu.matmul %93, %155, %cst_107 {dimension_numbers = #tpu.dot_dimension_numbers<[1], [0], [0], [1], [0, 0, 1, 1], [], []>} : vector<8x32xf32>, vector<32x8xf32>, vector<8x8xf32> -> vector<8x8xf32>
      %c3_108 = arith.constant 3 : index
      %c0_109 = arith.constant 0 : index
      %c0_110 = arith.constant 0 : index
      %157 = vector.load %arg13[%c3_108, %c0_109, %c0_110] : memref<4x8x8xf32, #tpu.memory_space<vmem>>, vector<1x8x8xf32>
      %158 = vector.shape_cast %157 : vector<1x8x8xf32> to vector<8x8xf32>
      %159 = vector.shape_cast %156 : vector<8x8xf32> to vector<1x8x8xf32>
      tpu.vector_store %arg13[%c3_108, %c0_109, %c0_110], %159 {strides = array<i32>} : memref<4x8x8xf32, #tpu.memory_space<vmem>>, vector<1x8x8xf32>,
      %c3_111 = arith.constant 3 : index
      %c0_112 = arith.constant 0 : index
      %c0_113 = arith.constant 0 : index
      %160 = vector.load %arg7[%c3_111, %c0_112, %c0_113] : memref<4x32x8xf32, #tpu.memory_space<vmem>>, vector<1x32x8xf32>
      %161 = vector.shape_cast %160 : vector<1x32x8xf32> to vector<32x8xf32>
      %cst_114 = arith.constant dense<0.000000e+00> : vector<8x8xf32>
      %162 = tpu.matmul %117, %161, %cst_114 {dimension_numbers = #tpu.dot_dimension_numbers<[1], [0], [0], [1], [0, 0, 1, 1], [], []>} : vector<8x32xf32>, vector<32x8xf32>, vector<8x8xf32> -> vector<8x8xf32>
      %c3_115 = arith.constant 3 : index
      %c0_116 = arith.constant 0 : index
      %c0_117 = arith.constant 0 : index
      %163 = vector.load %arg14[%c3_115, %c0_116, %c0_117] : memref<4x8x8xf32, #tpu.memory_space<vmem>>, vector<1x8x8xf32>
      %164 = vector.shape_cast %163 : vector<1x8x8xf32> to vector<8x8xf32>
      %165 = vector.shape_cast %162 : vector<8x8xf32> to vector<1x8x8xf32>
      tpu.vector_store %arg14[%c3_115, %c0_116, %c0_117], %165 {strides = array<i32>} : memref<4x8x8xf32, #tpu.memory_space<vmem>>, vector<1x8x8xf32>,
    } else {
    }
    %c0_4 = arith.constant 0 : index
    %c0_5 = arith.constant 0 : index
    %c0_6 = arith.constant 0 : index
    %5 = vector.load %arg2[%c0_4, %c0_5, %c0_6] : memref<1x8x32xf32, #tpu.memory_space<vmem>>, vector<1x8x32xf32>
    %6 = vector.shape_cast %5 : vector<1x8x32xf32> to vector<8x32xf32>
    %cst = arith.constant dense<0.000000e+00> : vector<8xf32>
    %7 = vector.multi_reduction <add>, %6, %cst [1] : vector<8x32xf32> to vector<8xf32>
    %8 = vector.shape_cast %7 : vector<8xf32> to vector<8x1xf32>
    %cst_7 = arith.constant 3.200000e+01 : f32
    %9 = vector.broadcast %cst_7 : f32 to vector<8x1xf32>
    %10 = arith.divf %8, %9 : vector<8x1xf32>
    %11 = vector.broadcast %10 : vector<8x1xf32> to vector<8x32xf32>
    %12 = arith.subf %6, %11 : vector<8x32xf32>
    %13 = arith.mulf %12, %12 : vector<8x32xf32>
    %cst_8 = arith.constant dense<0.000000e+00> : vector<8xf32>
    %14 = vector.multi_reduction <add>, %13, %cst_8 [1] : vector<8x32xf32> to vector<8xf32>
    %15 = vector.shape_cast %14 : vector<8xf32> to vector<8x1xf32>
    %cst_9 = arith.constant 3.200000e+01 : f32
    %16 = vector.broadcast %cst_9 : f32 to vector<8x1xf32>
    %17 = arith.divf %15, %16 : vector<8x1xf32>
    %18 = vector.broadcast %10 : vector<8x1xf32> to vector<8x32xf32>
    %19 = arith.subf %6, %18 : vector<8x32xf32>
    %cst_10 = arith.constant 9.99999997E-7 : f32
    %20 = vector.broadcast %cst_10 : f32 to vector<8x1xf32>
    %21 = arith.addf %17, %20 : vector<8x1xf32>
    %22 = math.rsqrt %21 : vector<8x1xf32>
    %23 = vector.broadcast %22 : vector<8x1xf32> to vector<8x32xf32>
    %24 = arith.mulf %19, %23 : vector<8x32xf32>
    %25 = vector.broadcast %0 : vector<1x32xf32> to vector<8x32xf32>
    %26 = arith.mulf %24, %25 : vector<8x32xf32>
    %27 = vector.broadcast %1 : vector<1x32xf32> to vector<8x32xf32>
    %28 = arith.addf %26, %27 : vector<8x32xf32>
    %c0_11 = arith.constant 0 : index
    %c0_12 = arith.constant 0 : index
    %c0_13 = arith.constant 0 : index
    %29 = vector.load %arg5[%c0_11, %c0_12, %c0_13] : memref<4x32x8xf32, #tpu.memory_space<vmem>>, vector<1x32x8xf32>
    %30 = vector.shape_cast %29 : vector<1x32x8xf32> to vector<32x8xf32>
    %cst_14 = arith.constant dense<0.000000e+00> : vector<8x8xf32>
    %31 = tpu.matmul %28, %30, %cst_14 {dimension_numbers = #tpu.dot_dimension_numbers<[1], [0], [0], [1], [0, 0, 1, 1], [], []>} : vector<8x32xf32>, vector<32x8xf32>, vector<8x8xf32> -> vector<8x8xf32>
    %c1 = arith.constant 1 : index
    %c0_15 = arith.constant 0 : index
    %c0_16 = arith.constant 0 : index
    %32 = vector.load %arg5[%c1, %c0_15, %c0_16] : memref<4x32x8xf32, #tpu.memory_space<vmem>>, vector<1x32x8xf32>
    %33 = vector.shape_cast %32 : vector<1x32x8xf32> to vector<32x8xf32>
    %cst_17 = arith.constant dense<0.000000e+00> : vector<8x8xf32>
    %34 = tpu.matmul %28, %33, %cst_17 {dimension_numbers = #tpu.dot_dimension_numbers<[1], [0], [0], [1], [0, 0, 1, 1], [], []>} : vector<8x32xf32>, vector<32x8xf32>, vector<8x8xf32> -> vector<8x8xf32>
    %c2 = arith.constant 2 : index
    %c0_18 = arith.constant 0 : index
    %c0_19 = arith.constant 0 : index
    %35 = vector.load %arg5[%c2, %c0_18, %c0_19] : memref<4x32x8xf32, #tpu.memory_space<vmem>>, vector<1x32x8xf32>
    %36 = vector.shape_cast %35 : vector<1x32x8xf32> to vector<32x8xf32>
    %cst_20 = arith.constant dense<0.000000e+00> : vector<8x8xf32>
    %37 = tpu.matmul %28, %36, %cst_20 {dimension_numbers = #tpu.dot_dimension_numbers<[1], [0], [0], [1], [0, 0, 1, 1], [], []>} : vector<8x32xf32>, vector<32x8xf32>, vector<8x8xf32> -> vector<8x8xf32>
    %c3 = arith.constant 3 : index
    %c0_21 = arith.constant 0 : index
    %c0_22 = arith.constant 0 : index
    %38 = vector.load %arg5[%c3, %c0_21, %c0_22] : memref<4x32x8xf32, #tpu.memory_space<vmem>>, vector<1x32x8xf32>
    %39 = vector.shape_cast %38 : vector<1x32x8xf32> to vector<32x8xf32>
    %cst_23 = arith.constant dense<0.000000e+00> : vector<8x8xf32>
    %40 = tpu.matmul %28, %39, %cst_23 {dimension_numbers = #tpu.dot_dimension_numbers<[1], [0], [0], [1], [0, 0, 1, 1], [], []>} : vector<8x32xf32>, vector<32x8xf32>, vector<8x8xf32> -> vector<8x8xf32>
    %41 = vector.shape_cast %31 : vector<8x8xf32> to vector<1x8x8xf32>
    %42 = vector.shape_cast %34 : vector<8x8xf32> to vector<1x8x8xf32>
    %43 = vector.shape_cast %37 : vector<8x8xf32> to vector<1x8x8xf32>
    %44 = vector.shape_cast %40 : vector<8x8xf32> to vector<1x8x8xf32>
    %45 = tpu.concatenate %41, %42, %43, %44 in 0 : vector<1x8x8xf32>, vector<1x8x8xf32>, vector<1x8x8xf32>, vector<1x8x8xf32> -> vector<4x8x8xf32>
    %c0_24 = arith.constant 0 : index
    %c0_25 = arith.constant 0 : index
    %c0_26 = arith.constant 0 : index
    %46 = vector.load %arg13[%c0_24, %c0_25, %c0_26] : memref<4x8x8xf32, #tpu.memory_space<vmem>>, vector<4x8x8xf32>
    %c0_27 = arith.constant 0 : index
    %c0_28 = arith.constant 0 : index
    %c0_29 = arith.constant 0 : index
    %47 = vector.load %arg14[%c0_27, %c0_28, %c0_29] : memref<4x8x8xf32, #tpu.memory_space<vmem>>, vector<4x8x8xf32>
    "tpu.trace_start"() <{level = 10 : i32, message = "hqd,hkd->hqk"}> : () -> ()
    %cst_30 = arith.constant dense<0.000000e+00> : vector<4x8x8xf32>
    %48 = tpu.matmul %45, %46, %cst_30 {dimension_numbers = #tpu.dot_dimension_numbers<[2], [2], [1], [1], [0, 0, 0, 1, 1, 1], [0], [0]>} : vector<4x8x8xf32>, vector<4x8x8xf32>, vector<4x8x8xf32> -> vector<4x8x8xf32>
    "tpu.trace_stop"() : () -> ()
    %cst_31 = arith.constant dense<0xFF800000> : vector<4x8xf32>
    %49 = vector.multi_reduction <maximumf>, %48, %cst_31 [2] : vector<4x8x8xf32> to vector<4x8xf32>
    %50 = vector.shape_cast %49 : vector<4x8xf32> to vector<4x8x1xf32>
    %51 = vector.broadcast %50 : vector<4x8x1xf32> to vector<4x8x8xf32>
    %52 = arith.subf %48, %51 : vector<4x8x8xf32>
    %53 = math.exp %52 : vector<4x8x8xf32>
    %cst_32 = arith.constant dense<0.000000e+00> : vector<4x8xf32>
    %54 = vector.multi_reduction <add>, %53, %cst_32 [2] : vector<4x8x8xf32> to vector<4x8xf32>
    %55 = vector.shape_cast %54 : vector<4x8xf32> to vector<4x8x1xf32>
    %56 = tpu.reciprocal %55 : vector<4x8x1xf32> -> vector<4x8x1xf32>
    %57 = vector.broadcast %56 : vector<4x8x1xf32> to vector<4x8x8xf32>
    %58 = arith.mulf %53, %57 : vector<4x8x8xf32>
    %c0_33 = arith.constant 0 : index
    %c0_34 = arith.constant 0 : index
    %c0_35 = arith.constant 0 : index
    %c0_36 = arith.constant 0 : index
    %59 = vector.load %arg12[%c0_33, %c0_34, %c0_35, %c0_36] : memref<1x4x8x8xf32, #tpu.memory_space<vmem>>, vector<1x4x8x8xf32>
    %60 = vector.shape_cast %59 : vector<1x4x8x8xf32> to vector<4x8x8xf32>
    %61 = vector.shape_cast %58 : vector<4x8x8xf32> to vector<1x4x8x8xf32>
    tpu.vector_store %arg12[%c0_33, %c0_34, %c0_35, %c0_36], %61 {strides = array<i32>} : memref<1x4x8x8xf32, #tpu.memory_space<vmem>>, vector<1x4x8x8xf32>,
    "tpu.trace_start"() <{level = 10 : i32, message = "hqk,hkd->hqd"}> : () -> ()
    %cst_37 = arith.constant dense<0.000000e+00> : vector<4x8x8xf32>
    %62 = tpu.matmul %58, %47, %cst_37 {dimension_numbers = #tpu.dot_dimension_numbers<[2], [1], [1], [2], [0, 0, 0, 1, 1, 2], [0], [0]>} : vector<4x8x8xf32>, vector<4x8x8xf32>, vector<4x8x8xf32> -> vector<4x8x8xf32>
    "tpu.trace_stop"() : () -> ()
    %c0_38 = arith.constant 0 : index
    %c0_39 = arith.constant 0 : index
    %c0_40 = arith.constant 0 : index
    %63 = vector.load %arg8[%c0_38, %c0_39, %c0_40] : memref<4x8x32xf32, #tpu.memory_space<vmem>>, vector<4x8x32xf32>
    "tpu.trace_start"() <{level = 10 : i32, message = "hqd,hdm->hqm"}> : () -> ()
    %cst_41 = arith.constant dense<0.000000e+00> : vector<4x8x32xf32>
    %64 = tpu.matmul %62, %63, %cst_41 {dimension_numbers = #tpu.dot_dimension_numbers<[2], [1], [1], [2], [0, 0, 0, 1, 1, 2], [0], [0]>} : vector<4x8x8xf32>, vector<4x8x32xf32>, vector<4x8x32xf32> -> vector<4x8x32xf32>
    "tpu.trace_stop"() : () -> ()
    %cst_42 = arith.constant dense<0.000000e+00> : vector<8x32xf32>
    %65 = vector.multi_reduction <add>, %64, %cst_42 [0] : vector<4x8x32xf32> to vector<8x32xf32>
    %66 = arith.addf %65, %6 : vector<8x32xf32>
    %c0_43 = arith.constant 0 : index
    %c0_44 = arith.constant 0 : index
    %c0_45 = arith.constant 0 : index
    %67 = vector.load %arg11[%c0_43, %c0_44, %c0_45] : memref<1x8x32xf32, #tpu.memory_space<vmem>>, vector<1x8x32xf32>
    %68 = vector.shape_cast %67 : vector<1x8x32xf32> to vector<8x32xf32>
    %69 = vector.shape_cast %66 : vector<8x32xf32> to vector<1x8x32xf32>
    tpu.vector_store %arg11[%c0_43, %c0_44, %c0_45], %69 {strides = array<i32>} : memref<1x8x32xf32, #tpu.memory_space<vmem>>, vector<1x8x32xf32>,
    return
  }
  func.func @transform_0(%arg0: i32, %arg1: i32) -> (i32, i32, i32) {
    %c0_i32 = arith.constant 0 : i32
    %c0_i32_0 = arith.constant 0 : i32
    return %arg0, %arg1, %c0_i32 : i32, i32, i32
  }
  func.func @transform_1(%arg0: i32, %arg1: i32) -> (i32, i32, i32) {
    %c0_i32 = arith.constant 0 : i32
    %c0_i32_0 = arith.constant 0 : i32
    %c0_i32_1 = arith.constant 0 : i32
    return %arg0, %c0_i32, %c0_i32_0 : i32, i32, i32
  }
  func.func @transform_2(%arg0: i32, %arg1: i32) -> (i32, i32, i32) {
    %c0_i32 = arith.constant 0 : i32
    %c0_i32_0 = arith.constant 0 : i32
    %c0_i32_1 = arith.constant 0 : i32
    return %arg0, %c0_i32, %c0_i32_0 : i32, i32, i32
  }
  func.func @transform_3(%arg0: i32, %arg1: i32) -> (i32, i32, i32) {
    %c0_i32 = arith.constant 0 : i32
    %c0_i32_0 = arith.constant 0 : i32
    %c0_i32_1 = arith.constant 0 : i32
    %c0_i32_2 = arith.constant 0 : i32
    return %c0_i32, %c0_i32_0, %c0_i32_1 : i32, i32, i32
  }
  func.func @transform_4(%arg0: i32, %arg1: i32) -> (i32, i32, i32) {
    %c0_i32 = arith.constant 0 : i32
    %c0_i32_0 = arith.constant 0 : i32
    %c0_i32_1 = arith.constant 0 : i32
    %c0_i32_2 = arith.constant 0 : i32
    return %c0_i32, %c0_i32_0, %c0_i32_1 : i32, i32, i32
  }
  func.func @transform_5(%arg0: i32, %arg1: i32) -> (i32, i32, i32) {
    %c0_i32 = arith.constant 0 : i32
    %c0_i32_0 = arith.constant 0 : i32
    %c0_i32_1 = arith.constant 0 : i32
    %c0_i32_2 = arith.constant 0 : i32
    return %c0_i32, %c0_i32_0, %c0_i32_1 : i32, i32, i32
  }
  func.func @transform_6(%arg0: i32, %arg1: i32) -> (i32, i32, i32) {
    %c0_i32 = arith.constant 0 : i32
    %c0_i32_0 = arith.constant 0 : i32
    %c0_i32_1 = arith.constant 0 : i32
    %c0_i32_2 = arith.constant 0 : i32
    return %c0_i32, %c0_i32_0, %c0_i32_1 : i32, i32, i32
  }
  func.func @transform_7(%arg0: i32, %arg1: i32) -> (i32, i32) {
    %c0_i32 = arith.constant 0 : i32
    %c0_i32_0 = arith.constant 0 : i32
    %c0_i32_1 = arith.constant 0 : i32
    return %c0_i32, %c0_i32_0 : i32, i32
  }
  func.func @transform_8(%arg0: i32, %arg1: i32) -> (i32, i32) {
    %c0_i32 = arith.constant 0 : i32
    %c0_i32_0 = arith.constant 0 : i32
    %c0_i32_1 = arith.constant 0 : i32
    return %c0_i32, %c0_i32_0 : i32, i32
  }
  func.func @transform_9(%arg0: i32, %arg1: i32) -> (i32, i32, i32) {
    %c0_i32 = arith.constant 0 : i32
    %c0_i32_0 = arith.constant 0 : i32
    return %arg0, %arg1, %c0_i32 : i32, i32, i32
  }
  func.func @transform_10(%arg0: i32, %arg1: i32) -> (i32, i32, i32, i32) {
    %c0_i32 = arith.constant 0 : i32
    %c0_i32_0 = arith.constant 0 : i32
    %c0_i32_1 = arith.constant 0 : i32
    return %arg0, %c0_i32, %arg1, %c0_i32_0 : i32, i32, i32, i32
  }
}

</mosaic_0001>

<llo_original>
// kernel: tpu_custom_call.1
$region0: #{tpu_custom_call.1}
  #allocation0 [shape = 'u32[]', space=smem, size = 0x4, offset = 0x4, fixed_abs, tag = 'smem constant byte address 0x4 - core index']
  #allocation1 [shape = 'u32[144,128]{1,0:T(1,128)}', space=vmem, size = 0x12000, scoped, tag = 'internal scratch']
  #allocation2 [shape = 'f32[4,8,8]{2,1,0:T(8,128)}', space=vmem, size = 0x4000, scoped, tag = 'scratch operand']
  #allocation3 [shape = 'f32[4,8,8]{2,1,0:T(8,128)}', space=vmem, size = 0x4000, scoped, tag = 'scratch operand']
  %s0 = inlined_call_operand.vmem [shape: f32[2,8,32], index: 0, kind: input, shape index: {}]
  %s1 = inlined_call_operand.vmem [shape: f32[2,8,32], index: 1, kind: input, shape index: {}]
  %s2 = inlined_call_operand.vmem [shape: f32[2,8,32], index: 2, kind: input, shape index: {}]
  %s3 = inlined_call_operand.vmem [shape: f32[4,32,8], index: 3, kind: input, shape index: {}]
  %s4 = inlined_call_operand.vmem [shape: f32[4,32,8], index: 4, kind: input, shape index: {}]
  %s5 = inlined_call_operand.vmem [shape: f32[4,32,8], index: 5, kind: input, shape index: {}]
  %s6 = inlined_call_operand.vmem [shape: f32[4,8,32], index: 6, kind: input, shape index: {}]
  %s7 = inlined_call_operand.vmem [shape: f32[1,32], index: 7, kind: input, shape index: {}]
  %s8 = inlined_call_operand.vmem [shape: f32[1,32], index: 8, kind: input, shape index: {}]
  %s9 = inlined_call_operand.hbm [shape: f32[2,8,32], index: 9, kind: output, shape index: {0}]
  %s10 = inlined_call_operand.hbm [shape: f32[2,4,8,8], index: 10, kind: output, shape index: {1}]
  %11 = xla_tuple %s9, %s10
  %s12 = sld [smem:[#allocation0]]
  $region81: #{tpu_custom_call.1} parent=0
    _
  %s14 = ssub.s32 1, %s12
  %s15 = scalar_select 0, %s14, %s12
  $region1: #{tpu_custom_call.1} parent=0
    #allocation4 [shape = 'u8[8192]{0}', space=vmem, size = 0x2000, scoped, tag = 'output window, operand 0']
    #allocation5 [shape = 's32[2]{0}', space=sflag, size = 0x8, scoped, tag = 'scoped memory for tpu_custom_call.1']
    #allocation6 [shape = 'u8[32768]{0}', space=vmem, size = 0x8000, scoped, tag = 'output window, operand 1']
    #allocation7 [shape = 's32[2]{0}', space=sflag, size = 0x8, scoped, tag = 'scoped memory for tpu_custom_call.1']
    %16 = vsyncpa [#allocation5], 0
    %s17 = scalar_lea.sflag [#allocation5], 1
    %18 = vsyncpa %s17, 0
    %19 = vsyncpa [#allocation7], 0
    %s20 = scalar_lea.sflag [#allocation7], 1
    %21 = vsyncpa %s20, 0
    loop: start=0, step=1, limit=4
    $region2: #{tpu_custom_call.1} parent=1 // loop_pre_header
      _
    $region3: #{tpu_custom_call.1} parent=1 // loop_header
      %s23 = sphi 0, %s27
      %p24 = scmp.ge.s32.totalorder %s23, 4
      %s30 = sphi 0, %s42
      %s31 = sphi 0, %s38
      %s32 = sphi 0, %s30
      %s33 = sphi 0, %s31
      %s34 = sphi 0, %s32
      %s35 = sphi 0, %s33
      %s47 = sphi 0, %s49
      %s50 = sphi 0, %s47
      %s51 = sphi 0, %s50
      %s67 = sphi 0, %s51
      %s73 = sphi 0, %s75
      %s76 = sphi 0, %s73
      %s77 = sphi 0, %s76
      %s93 = sphi 0, %s77
      %s99 = sphi 0, %s101
      %s102 = sphi 0, %s99
      %s103 = sphi 0, %s102
      %s119 = sphi 0, %s103
      %s123 = sphi 0, %s123
      %s125 = sphi 0, %s123
      %s126 = sphi 0, %s125
      %s140 = sphi 0, %s126
      %s144 = sphi 0, %s144
      %s146 = sphi 0, %s144
      %s147 = sphi 0, %s146
      %s161 = sphi 0, %s147
      %s165 = sphi 0, %s165
      %s167 = sphi 0, %s165
      %s168 = sphi 0, %s167
      %s182 = sphi 0, %s168
      %s186 = sphi 0, %s186
      %s188 = sphi 0, %s186
      %s189 = sphi 0, %s188
      %s203 = sphi 0, %s189
      %s207 = sphi 0, %s207
      %s209 = sphi 0, %s207
      %s210 = sphi 0, %s209
      %s224 = sphi 0, %s210
      %s228 = sphi 0, %s228
      %s230 = sphi 0, %s228
      %s231 = sphi 0, %s230
      %s245 = sphi 0, %s231
      %s253 = sphi 0, %s255
      %s256 = sphi 0, %s253
      %s257 = sphi 0, %s256
      %s273 = sphi 0, %s257
      %s281 = sphi 0, %s283
      %s284 = sphi 0, %s281
      %s285 = sphi 0, %s284
      %s301 = sphi 0, %s285
    $region4: #{tpu_custom_call.1} parent=1 // loop_header_branch
      %26 = sbr.rel (%p24) target = $region8
    $region5: #{tpu_custom_call.1} parent=1 // loop_body
      %s28 = ssub.s32 %s23, 1
      %s29 = ssub.s32 %s23, 2
      %s36 = sadd.s32 1, %s31
      %p37 = scmp.ge.s32.totalorder %s36, 1
      %s38 = scalar_select %p37, 0, %s36
      %s39 = sadd.s32 1, %s30
      %s40 = scalar_select %p37, %s39, %s30
      %p41 = scmp.ge.s32.totalorder %s40, 2
      %s42 = scalar_select %p41, 0, %s40
      %s43 = ssub.s32 %s30, %s42
      %s44 = ssub.s32 %s31, %s38
      %s45 = sor.u32 %s43, %s44
      %p46 = scmp.eq.s32.totalorder %s45, 0
      %s48 = sadd.s32 %s47, 1
      %s49 = scalar_select %p46, %s47, %s48
      %p52 = pneg %p46
      %p53 = scmp.eq.s32.totalorder %s23, 1
      %p54 = por %p52, %p53
      %p55 = scmp.ne.s32.totalorder %s47, %s50
      %p56 = scmp.eq.s32.totalorder %s23, 0
      %p57 = por %p55, %p56
      %p58 = scmp.ne.s32.totalorder %s47, %s50
      %p59 = scmp.eq.s32.totalorder %s28, 1
      %p60 = por %p58, %p59
      %p61 = scmp.ne.s32.totalorder %s50, %s51
      %p62 = scmp.eq.s32.totalorder %s28, 0
      %p63 = por %p61, %p62
      %p64 = scmp.ne.s32.totalorder %s50, %s51
      %p65 = scmp.eq.s32.totalorder %s29, 1
      %p66 = por %p64, %p65
      %p68 = scmp.ne.s32.totalorder %s51, %s67
      %p69 = scmp.eq.s32.totalorder %s29, 0
      %p70 = por %p68, %p69
      %s71 = ssub.s32 %s30, %s42
      %p72 = scmp.eq.s32.totalorder %s71, 0
      %s74 = sadd.s32 %s73, 1
      %s75 = scalar_select %p72, %s73, %s74
      %p78 = pneg %p72
      %p79 = scmp.eq.s32.totalorder %s23, 1
      %p80 = por %p78, %p79
      %p81 = scmp.ne.s32.totalorder %s73, %s76
      %p82 = scmp.eq.s32.totalorder %s23, 0
      %p83 = por %p81, %p82
      %p84 = scmp.ne.s32.totalorder %s73, %s76
      %p85 = scmp.eq.s32.totalorder %s28, 1
      %p86 = por %p84, %p85
      %p87 = scmp.ne.s32.totalorder %s76, %s77
      %p88 = scmp.eq.s32.totalorder %s28, 0
      %p89 = por %p87, %p88
      %p90 = scmp.ne.s32.totalorder %s76, %s77
      %p91 = scmp.eq.s32.totalorder %s29, 1
      %p92 = por %p90, %p91
      %p94 = scmp.ne.s32.totalorder %s77, %s93
      %p95 = scmp.eq.s32.totalorder %s29, 0
      %p96 = por %p94, %p95
      %s97 = ssub.s32 %s30, %s42
      %p98 = scmp.eq.s32.totalorder %s97, 0
      %s100 = sadd.s32 %s99, 1
      %s101 = scalar_select %p98, %s99, %s100
      %p104 = pneg %p98
      %p105 = scmp.eq.s32.totalorder %s23, 1
      %p106 = por %p104, %p105
      %p107 = scmp.ne.s32.totalorder %s99, %s102
      %p108 = scmp.eq.s32.totalorder %s23, 0
      %p109 = por %p107, %p108
      %p110 = scmp.ne.s32.totalorder %s99, %s102
      %p111 = scmp.eq.s32.totalorder %s28, 1
      %p112 = por %p110, %p111
      %p113 = scmp.ne.s32.totalorder %s102, %s103
      %p114 = scmp.eq.s32.totalorder %s28, 0
      %p115 = por %p113, %p114
      %p116 = scmp.ne.s32.totalorder %s102, %s103
      %p117 = scmp.eq.s32.totalorder %s29, 1
      %p118 = por %p116, %p117
      %p120 = scmp.ne.s32.totalorder %s103, %s119
      %p121 = scmp.eq.s32.totalorder %s29, 0
      %p122 = por %p120, %p121
      %s124 = sadd.s32 %s123, 1
      %p127 = scmp.eq.s32.totalorder %s23, 1
      %p128 = scmp.ne.s32.totalorder %s123, %s125
      %p129 = scmp.eq.s32.totalorder %s23, 0
      %p130 = por %p128, %p129
      %p131 = scmp.ne.s32.totalorder %s123, %s125
      %p132 = scmp.eq.s32.totalorder %s28, 1
      %p133 = por %p131, %p132
      %p134 = scmp.ne.s32.totalorder %s125, %s126
      %p135 = scmp.eq.s32.totalorder %s28, 0
      %p136 = por %p134, %p135
      %p137 = scmp.ne.s32.totalorder %s125, %s126
      %p138 = scmp.eq.s32.totalorder %s29, 1
      %p139 = por %p137, %p138
      %p141 = scmp.ne.s32.totalorder %s126, %s140
      %p142 = scmp.eq.s32.totalorder %s29, 0
      %p143 = por %p141, %p142
      %s145 = sadd.s32 %s144, 1
      %p148 = scmp.eq.s32.totalorder %s23, 1
      %p149 = scmp.ne.s32.totalorder %s144, %s146
      %p150 = scmp.eq.s32.totalorder %s23, 0
      %p151 = por %p149, %p150
      %p152 = scmp.ne.s32.totalorder %s144, %s146
      %p153 = scmp.eq.s32.totalorder %s28, 1
      %p154 = por %p152, %p153
      %p155 = scmp.ne.s32.totalorder %s146, %s147
      %p156 = scmp.eq.s32.totalorder %s28, 0
      %p157 = por %p155, %p156
      %p158 = scmp.ne.s32.totalorder %s146, %s147
      %p159 = scmp.eq.s32.totalorder %s29, 1
      %p160 = por %p158, %p159
      %p162 = scmp.ne.s32.totalorder %s147, %s161
      %p163 = scmp.eq.s32.totalorder %s29, 0
      %p164 = por %p162, %p163
      %s166 = sadd.s32 %s165, 1
      %p169 = scmp.eq.s32.totalorder %s23, 1
      %p170 = scmp.ne.s32.totalorder %s165, %s167
      %p171 = scmp.eq.s32.totalorder %s23, 0
      %p172 = por %p170, %p171
      %p173 = scmp.ne.s32.totalorder %s165, %s167
      %p174 = scmp.eq.s32.totalorder %s28, 1
      %p175 = por %p173, %p174
      %p176 = scmp.ne.s32.totalorder %s167, %s168
      %p177 = scmp.eq.s32.totalorder %s28, 0
      %p178 = por %p176, %p177
      %p179 = scmp.ne.s32.totalorder %s167, %s168
      %p180 = scmp.eq.s32.totalorder %s29, 1
      %p181 = por %p179, %p180
      %p183 = scmp.ne.s32.totalorder %s168, %s182
      %p184 = scmp.eq.s32.totalorder %s29, 0
      %p185 = por %p183, %p184
      %s187 = sadd.s32 %s186, 1
      %p190 = scmp.eq.s32.totalorder %s23, 1
      %p191 = scmp.ne.s32.totalorder %s186, %s188
      %p192 = scmp.eq.s32.totalorder %s23, 0
      %p193 = por %p191, %p192
      %p194 = scmp.ne.s32.totalorder %s186, %s188
      %p195 = scmp.eq.s32.totalorder %s28, 1
      %p196 = por %p194, %p195
      %p197 = scmp.ne.s32.totalorder %s188, %s189
      %p198 = scmp.eq.s32.totalorder %s28, 0
      %p199 = por %p197, %p198
      %p200 = scmp.ne.s32.totalorder %s188, %s189
      %p201 = scmp.eq.s32.totalorder %s29, 1
      %p202 = por %p200, %p201
      %p204 = scmp.ne.s32.totalorder %s189, %s203
      %p205 = scmp.eq.s32.totalorder %s29, 0
      %p206 = por %p204, %p205
      %s208 = sadd.s32 %s207, 1
      %p211 = scmp.eq.s32.totalorder %s23, 1
      %p212 = scmp.ne.s32.totalorder %s207, %s209
      %p213 = scmp.eq.s32.totalorder %s23, 0
      %p214 = por %p212, %p213
      %p215 = scmp.ne.s32.totalorder %s207, %s209
      %p216 = scmp.eq.s32.totalorder %s28, 1
      %p217 = por %p215, %p216
      %p218 = scmp.ne.s32.totalorder %s209, %s210
      %p219 = scmp.eq.s32.totalorder %s28, 0
      %p220 = por %p218, %p219
      %p221 = scmp.ne.s32.totalorder %s209, %s210
      %p222 = scmp.eq.s32.totalorder %s29, 1
      %p223 = por %p221, %p222
      %p225 = scmp.ne.s32.totalorder %s210, %s224
      %p226 = scmp.eq.s32.totalorder %s29, 0
      %p227 = por %p225, %p226
      %s229 = sadd.s32 %s228, 1
      %p232 = scmp.eq.s32.totalorder %s23, 1
      %p233 = scmp.ne.s32.totalorder %s228, %s230
      %p234 = scmp.eq.s32.totalorder %s23, 0
      %p235 = por %p233, %p234
      %p236 = scmp.ne.s32.totalorder %s228, %s230
      %p237 = scmp.eq.s32.totalorder %s28, 1
      %p238 = por %p236, %p237
      %p239 = scmp.ne.s32.totalorder %s230, %s231
      %p240 = scmp.eq.s32.totalorder %s28, 0
      %p241 = por %p239, %p240
      %p242 = scmp.ne.s32.totalorder %s230, %s231
      %p243 = scmp.eq.s32.totalorder %s29, 1
      %p244 = por %p242, %p243
      %p246 = scmp.ne.s32.totalorder %s231, %s245
      %p247 = scmp.eq.s32.totalorder %s29, 0
      %p248 = por %p246, %p247
      %s249 = ssub.s32 %s30, %s42
      %s250 = ssub.s32 %s31, %s38
      %s251 = sor.u32 %s249, %s250
      %p252 = scmp.eq.s32.totalorder %s251, 0
      %s254 = sadd.s32 %s253, 1
      %s255 = scalar_select %p252, %s253, %s254
      %p258 = pneg %p252
      %p259 = scmp.eq.s32.totalorder %s23, 1
      %p260 = por %p258, %p259
      %p261 = scmp.ne.s32.totalorder %s253, %s256
      %p262 = scmp.eq.s32.totalorder %s23, 0
      %p263 = por %p261, %p262
      %p264 = scmp.ne.s32.totalorder %s253, %s256
      %p265 = scmp.eq.s32.totalorder %s28, 1
      %p266 = por %p264, %p265
      %p267 = scmp.ne.s32.totalorder %s256, %s257
      %p268 = scmp.eq.s32.totalorder %s28, 0
      %p269 = por %p267, %p268
      %p270 = scmp.ne.s32.totalorder %s256, %s257
      %p271 = scmp.eq.s32.totalorder %s29, 1
      %p272 = por %p270, %p271
      %p274 = scmp.ne.s32.totalorder %s257, %s273
      %p275 = scmp.eq.s32.totalorder %s29, 0
      %p276 = por %p274, %p275
      %s277 = ssub.s32 %s30, %s42
      %s278 = ssub.s32 %s31, %s38
      %s279 = sor.u32 %s277, %s278
      %p280 = scmp.eq.s32.totalorder %s279, 0
      %s282 = sadd.s32 %s281, 1
      %s283 = scalar_select %p280, %s281, %s282
      %p286 = pneg %p280
      %p287 = scmp.eq.s32.totalorder %s23, 1
      %p288 = por %p286, %p287
      %p289 = scmp.ne.s32.totalorder %s281, %s284
      %p290 = scmp.eq.s32.totalorder %s23, 0
      %p291 = por %p289, %p290
      %p292 = scmp.ne.s32.totalorder %s281, %s284
      %p293 = scmp.eq.s32.totalorder %s28, 1
      %p294 = por %p292, %p293
      %p295 = scmp.ne.s32.totalorder %s284, %s285
      %p296 = scmp.eq.s32.totalorder %s28, 0
      %p297 = por %p295, %p296
      %p298 = scmp.ne.s32.totalorder %s284, %s285
      %p299 = scmp.eq.s32.totalorder %s29, 1
      %p300 = por %p298, %p299
      %p302 = scmp.ne.s32.totalorder %s285, %s301
      %p303 = scmp.eq.s32.totalorder %s29, 0
      %p304 = por %p302, %p303
      %p305 = scmp.le.s32.totalorder 1, %s23
      %p306 = scmp.lt.s32.totalorder %s23, 3
      %p307 = pnand %p305, %p306
      %p308 = pneg %p307
      // Predicated region
      $region9: #{tpu_custom_call.1} parent=5 // pred_check
        _
      $region10: #{tpu_custom_call.1} parent=5 // pred_check_branch
        %310 = sbr.rel (%p307) target = $region12
      $region11: #{tpu_custom_call.1} parent=5 // pred_region
        %s311 = ssub.s32 %s23, 1
        // Predicated region
        $region13: #{tpu_custom_call.1} parent=11 // pred_check
          %p312 = pneg %p136
        $region14: #{tpu_custom_call.1} parent=11 // pred_check_branch
          %314 = sbr.rel (%p312) target = $region16
        $region15: #{tpu_custom_call.1} parent=11 // pred_region
          _
        $region16: #{tpu_custom_call.1} parent=11 // pred_fallthru
          _
        // Predicated region
        $region17: #{tpu_custom_call.1} parent=11 // pred_check
          %p315 = pneg %p157
        $region18: #{tpu_custom_call.1} parent=11 // pred_check_branch
          %317 = sbr.rel (%p315) target = $region20
        $region19: #{tpu_custom_call.1} parent=11 // pred_region
          _
        $region20: #{tpu_custom_call.1} parent=11 // pred_fallthru
          _
        // Predicated region
        $region21: #{tpu_custom_call.1} parent=11 // pred_check
          %p318 = pneg %p178
        $region22: #{tpu_custom_call.1} parent=11 // pred_check_branch
          %320 = sbr.rel (%p318) target = $region24
        $region23: #{tpu_custom_call.1} parent=11 // pred_region
          _
        $region24: #{tpu_custom_call.1} parent=11 // pred_fallthru
          _
        // Predicated region
        $region25: #{tpu_custom_call.1} parent=11 // pred_check
          %p321 = pneg %p199
        $region26: #{tpu_custom_call.1} parent=11 // pred_check_branch
          %323 = sbr.rel (%p321) target = $region28
        $region27: #{tpu_custom_call.1} parent=11 // pred_region
          _
        $region28: #{tpu_custom_call.1} parent=11 // pred_fallthru
          _
        // Predicated region
        $region29: #{tpu_custom_call.1} parent=11 // pred_check
          %p324 = pneg %p220
        $region30: #{tpu_custom_call.1} parent=11 // pred_check_branch
          %326 = sbr.rel (%p324) target = $region32
        $region31: #{tpu_custom_call.1} parent=11 // pred_region
          _
        $region32: #{tpu_custom_call.1} parent=11 // pred_fallthru
          _
        // Predicated region
        $region33: #{tpu_custom_call.1} parent=11 // pred_check
          %p327 = pneg %p241
        $region34: #{tpu_custom_call.1} parent=11 // pred_check_branch
          %329 = sbr.rel (%p327) target = $region36
        $region35: #{tpu_custom_call.1} parent=11 // pred_region
          _
        $region36: #{tpu_custom_call.1} parent=11 // pred_fallthru
          _
      $region12: #{tpu_custom_call.1} parent=5 // pred_fallthru
        _
      %p330 = scmp.lt.s32.totalorder %s23, 2
      // Predicated region
      $region37: #{tpu_custom_call.1} parent=5 // pred_check
        %p331 = pneg %p330
      $region38: #{tpu_custom_call.1} parent=5 // pred_check_branch
        %333 = sbr.rel (%p331) target = $region40
      $region39: #{tpu_custom_call.1} parent=5 // pred_region
        // Predicated region
        $region41: #{tpu_custom_call.1} parent=39 // pred_check
          %p334 = pneg %p57
        $region42: #{tpu_custom_call.1} parent=39 // pred_check_branch
          %336 = sbr.rel (%p334) target = $region44
        $region43: #{tpu_custom_call.1} parent=39 // pred_region
          %p337 = scmp.lt.s32.totalorder %s30, 1
          %s338 = scalar_select %p337, %s30, 1
          %p339 = scmp.lt.s32.totalorder %s31, 0
          %s340 = scalar_select %p339, %s31, 0
          %s341 = sadd.s32 %s340, %s338
          %s342 = smul.addr %s341, 8
          %s343 = scalar_lea.vmem %s0, %s342
        $region44: #{tpu_custom_call.1} parent=39 // pred_fallthru
          _
        // Predicated region
        $region45: #{tpu_custom_call.1} parent=39 // pred_check
          %p344 = pneg %p83
        $region46: #{tpu_custom_call.1} parent=39 // pred_check_branch
          %346 = sbr.rel (%p344) target = $region48
        $region47: #{tpu_custom_call.1} parent=39 // pred_region
          %p347 = scmp.lt.s32.totalorder %s30, 1
          %s348 = scalar_select %p347, %s30, 1
          %s349 = smul.addr %s348, 8
          %s350 = scalar_lea.vmem %s1, %s349
        $region48: #{tpu_custom_call.1} parent=39 // pred_fallthru
          _
        // Predicated region
        $region49: #{tpu_custom_call.1} parent=39 // pred_check
          %p351 = pneg %p109
        $region50: #{tpu_custom_call.1} parent=39 // pred_check_branch
          %353 = sbr.rel (%p351) target = $region52
        $region51: #{tpu_custom_call.1} parent=39 // pred_region
          %p354 = scmp.lt.s32.totalorder %s30, 1
          %s355 = scalar_select %p354, %s30, 1
          %s356 = smul.addr %s355, 8
          %s357 = scalar_lea.vmem %s2, %s356
        $region52: #{tpu_custom_call.1} parent=39 // pred_fallthru
          _
      $region40: #{tpu_custom_call.1} parent=5 // pred_fallthru
        _
      %p358 = scmp.le.s32.totalorder 1, %s23
      %p359 = scmp.lt.s32.totalorder %s23, 3
      %p360 = pnand %p358, %p359
      %p361 = pneg %p360
      // Predicated region
      $region53: #{tpu_custom_call.1} parent=5 // pred_check
        _
      $region54: #{tpu_custom_call.1} parent=5 // pred_check_branch
        %363 = sbr.rel (%p360) target = $region56
      $region55: #{tpu_custom_call.1} parent=5 // pred_region
        %s364 = ssub.s32 %s23, 1
        %p365 = scmp.lt.s32.totalorder %s32, 1
        %s366 = scalar_select %p365, %s32, 1
        %p367 = scmp.lt.s32.totalorder %s33, 0
        %s368 = scalar_select %p367, %s33, 0
        %s369 = sadd.s32 %s368, %s366
        %s370 = smul.addr %s369, 8
        %s371 = scalar_lea.vmem %s0, %s370
        %p372 = pneg %p63
        %p373 = pneg %p60
        %p374 = scmp.lt.s32.totalorder %s32, 1
        %s375 = scalar_select %p374, %s32, 1
        %s376 = smul.addr %s375, 8
        %s377 = scalar_lea.vmem %s1, %s376
        %p378 = pneg %p89
        %p379 = pneg %p86
        %p380 = scmp.lt.s32.totalorder %s32, 1
        %s381 = scalar_select %p380, %s32, 1
        %s382 = smul.addr %s381, 8
        %s383 = scalar_lea.vmem %s2, %s382
        %p384 = pneg %p115
        %p385 = pneg %p112
        %p386 = pneg %p136
        %p387 = pneg %p133
        %p388 = pneg %p157
        %p389 = pneg %p154
        %p390 = pneg %p178
        %p391 = pneg %p175
        %p392 = pneg %p199
        %p393 = pneg %p196
        %p394 = pneg %p220
        %p395 = pneg %p217
        %p396 = pneg %p241
        %p397 = pneg %p238
        %p398 = pneg %p269
        %p399 = pneg %p266
        %s400 = sand.u32 %s256, 1
        %s401 = scalar_lea.sflag [#allocation5], %s400
        %s402 = sand.u32 %s256, 1
        %s403 = smul.addr %s402, 8
        %s404 = scalar_lea.vmem [#allocation4], %s403
        %p405 = pneg %p297
        %p406 = pneg %p294
        %s407 = sand.u32 %s284, 1
        %s408 = scalar_lea.sflag [#allocation7], %s407
        %s409 = sand.u32 %s284, 1
        %s410 = smul.addr %s409, 32
        %s411 = scalar_lea.vmem [#allocation6], %s410
        %p412 = scmp.lt.s32.totalorder %s32, 1
        %s413 = scalar_select %p412, %s32, 1
        %p414 = scmp.lt.s32.totalorder %s33, 0
        %s415 = scalar_select %p414, %s33, 0
        %s416 = sadd.s32 %s415, %s413
        %s417 = smul.addr %s416, 8
        %s418 = scalar_lea.vmem %s0, %s417
        %p419 = scmp.lt.s32.totalorder %s32, 1
        %s420 = scalar_select %p419, %s32, 1
        %s421 = smul.addr %s420, 8
        %s422 = scalar_lea.vmem %s1, %s421
        %p423 = scmp.lt.s32.totalorder %s32, 1
        %s424 = scalar_select %p423, %s32, 1
        %s425 = smul.addr %s424, 8
        %s426 = scalar_lea.vmem %s2, %s425
        %v427 = vld [vmem:[%s7] sm:$0x1]
        %v428 = vld [vmem:[%s8] sm:$0x1]
        %p429 = scmp.eq.s32.totalorder %s33, 0
        // Predicated region
        $region57: #{tpu_custom_call.1} parent=55 // pred_check
          %p430 = pneg %p429
        $region58: #{tpu_custom_call.1} parent=55 // pred_check_branch
          %432 = sbr.rel (%p430) target = $region60
        $region59: #{tpu_custom_call.1} parent=55 // pred_region
          %v433 = vld [vmem:[%s422] sm:$0xff]
          %vm434 = vcmask 261120
          %v435 = vsel %vm434, %v433, 0.0
          %436 = vadd.xlane.f32.xlu0 %v435
          %v437 = vpop.xlane.xlu0 %436
          %v438 = vrcp.pop 32.0
          %v439 = vmul.f32 %v437, %v438
          %v440 = vsub.f32 %v433, %v439
          %v441 = vmul.f32 %v440, %v440
          %v442 = vsel %vm434, %v441, 0.0
          %443 = vadd.xlane.f32.xlu0 %v442
          %v444 = vpop.xlane.xlu0 %443
          %v445 = vmul.f32 %v444, %v438
          %v446 = vadd.f32 %v445, 1e-06
          %v447 = vrsqrt.pop %v446
          %v448 = vmul.f32 %v440, %v447
          %v450 = vlaneseq
          %v451 = vshrl.u32 %v450, 7
          %v452 = vsub.s32 0, %v451
          %v453 = vrot.slane %v427, %v452
          %v455 = vmul.f32 %v448, %v453
          %v457 = vlaneseq
          %v458 = vshrl.u32 %v457, 7
          %v459 = vsub.s32 0, %v458
          %v460 = vrot.slane %v428, %v459
          %v462 = vadd.f32 %v455, %v460
          %v463 = vld [vmem:[%s426] sm:$0xff]
          %v464 = vsel %vm434, %v463, 0.0
          %465 = vadd.xlane.f32.xlu0 %v464
          %v466 = vpop.xlane.xlu0 %465
          %v467 = vmul.f32 %v466, %v438
          %v468 = vsub.f32 %v463, %v467
          %v469 = vmul.f32 %v468, %v468
          %v470 = vsel %vm434, %v469, 0.0
          %471 = vadd.xlane.f32.xlu0 %v470
          %v472 = vpop.xlane.xlu0 %471
          %v473 = vmul.f32 %v472, %v438
          %v474 = vadd.f32 %v473, 1e-06
          %v475 = vrsqrt.pop %v474
          %v476 = vmul.f32 %v468, %v475
          %v477 = vmul.f32 %v476, %v453
          %v478 = vadd.f32 %v477, %v460
          %v479 = vld [vmem:[%s4] sm:$0xff]
          %v480 = vld [vmem:[%s4 + $0x8] sm:$0xff]
          %v481 = vld [vmem:[%s4 + $0x10] sm:$0xff]
          %v482 = vld [vmem:[%s4 + $0x18] sm:$0xff]
          %v484 = vsel %vm434, %v462, 0
          %486 = vmatprep.subr.mxu0 0.0
          %487 = vmatpush1.msra.mxu0 0.0
          %488 = vmatprep.subr.mxu0 0.0
          %489 = vmatpush1.msra.mxu0 0.0
          %490 = vmatprep.subr.mxu0 0.0
          %491 = vmatpush1.msra.mxu0 0.0
          %492 = vmatprep.subr.mxu0 0.0
          %493 = vmatpush1.msra.mxu0 0.0
          %494 = vmatprep.subr.mxu0 0.0
          %495 = vmatpush1.msra.mxu0 0.0
          %496 = vmatprep.subr.mxu0 0.0
          %497 = vmatpush1.msra.mxu0 0.0
          %498 = vmatprep.subr.mxu0 0.0
          %499 = vmatpush1.msra.mxu0 0.0
          %500 = vmatprep.subr.mxu0 0.0
          %501 = vmatpush1.msra.mxu0 0.0
          %502 = vmatprep.subr.mxu0 0.0
          %503 = vmatpush1.msra.mxu0 0.0
          %504 = vmatprep.subr.mxu0 0.0
          %505 = vmatpush1.msra.mxu0 0.0
          %506 = vmatprep.subr.mxu0 0.0
          %507 = vmatpush1.msra.mxu0 0.0
          %508 = vmatprep.subr.mxu0 0.0
          %509 = vmatpush1.msra.mxu0 0.0
          %510 = vmatprep.subr.mxu0 0.0
          %511 = vmatpush1.msra.mxu0 %v482
          %512 = vmatprep.subr.mxu0 0.0
          %513 = vmatpush1.msra.mxu0 %v481
          %514 = vmatprep.subr.mxu0 0.0
          %515 = vmatpush1.msra.mxu0 %v480
          %516 = vmatprep.subr.mxu0 0.0
          %517 = vmatpush1.msra.mxu0 %v479
          %518 = vmatprep.subr.mxu0 0.0
          %519 = vmatpush2.msra.mxu0 0.0
          %520 = vmatprep.subr.mxu0 0.0
          %521 = vmatpush2.msra.mxu0 0.0
          %522 = vmatprep.subr.mxu0 0.0
          %523 = vmatpush2.msra.mxu0 0.0
          %524 = vmatprep.subr.mxu0 0.0
          %525 = vmatpush2.msra.mxu0 0.0
          %526 = vmatprep.subr.mxu0 0.0
          %527 = vmatpush2.msra.mxu0 0.0
          %528 = vmatprep.subr.mxu0 0.0
          %529 = vmatpush2.msra.mxu0 0.0
          %530 = vmatprep.subr.mxu0 0.0
          %531 = vmatpush2.msra.mxu0 0.0
          %532 = vmatprep.subr.mxu0 0.0
          %533 = vmatpush2.msra.mxu0 0.0
          %534 = vmatprep.subr.mxu0 0.0
          %535 = vmatpush2.msra.mxu0 0.0
          %536 = vmatprep.subr.mxu0 0.0
          %537 = vmatpush2.msra.mxu0 0.0
          %538 = vmatprep.subr.mxu0 0.0
          %539 = vmatpush2.msra.mxu0 0.0
          %540 = vmatprep.subr.mxu0 0.0
          %541 = vmatpush2.msra.mxu0 0.0
          %542 = vmatprep.subr.mxu0 0.0
          %543 = vmatpush2.msra.mxu0 0.0
          %544 = vmatprep.subr.mxu0 0.0
          %545 = vmatpush2.msra.mxu0 0.0
          %546 = vmatprep.subr.mxu0 0.0
          %547 = vmatpush2.msra.mxu0 0.0
          %548 = vmatprep.subr.mxu0 0.0
          %549 = vmatpush2.msra.mxu0 0.0
          %550 = vmatprep.mubr.f32.mxu0 0.0
          %551 = vmatmul.mubr.f32.gmra.mxu0 %v484
          %v552 = vpop.f32.mrf.mxu0
          %v553 = vadd.f32 0.0, %v552
          %v554 = vpop.f32.mrf.mxu0
          %555 = vdwg.mxu0
          %vm556 = vcmask 64512
          %557 = vst.msk [vmem:[#allocation2] sm:$0xff] %vm556, %v553
          %v558 = vld [vmem:[%s5] sm:$0xff]
          %v559 = vld [vmem:[%s5 + $0x8] sm:$0xff]
          %v560 = vld [vmem:[%s5 + $0x10] sm:$0xff]
          %v561 = vld [vmem:[%s5 + $0x18] sm:$0xff]
          %v563 = vsel %vm434, %v478, 0
          %565 = vmatprep.subr.mxu0 0.0
          %566 = vmatpush1.msra.mxu0 0.0
          %567 = vmatprep.subr.mxu0 0.0
          %568 = vmatpush1.msra.mxu0 0.0
          %569 = vmatprep.subr.mxu0 0.0
          %570 = vmatpush1.msra.mxu0 0.0
          %571 = vmatprep.subr.mxu0 0.0
          %572 = vmatpush1.msra.mxu0 0.0
          %573 = vmatprep.subr.mxu0 0.0
          %574 = vmatpush1.msra.mxu0 0.0
          %575 = vmatprep.subr.mxu0 0.0
          %576 = vmatpush1.msra.mxu0 0.0
          %577 = vmatprep.subr.mxu0 0.0
          %578 = vmatpush1.msra.mxu0 0.0
          %579 = vmatprep.subr.mxu0 0.0
          %580 = vmatpush1.msra.mxu0 0.0
          %581 = vmatprep.subr.mxu0 0.0
          %582 = vmatpush1.msra.mxu0 0.0
          %583 = vmatprep.subr.mxu0 0.0
          %584 = vmatpush1.msra.mxu0 0.0
          %585 = vmatprep.subr.mxu0 0.0
          %586 = vmatpush1.msra.mxu0 0.0
          %587 = vmatprep.subr.mxu0 0.0
          %588 = vmatpush1.msra.mxu0 0.0
          %589 = vmatprep.subr.mxu0 0.0
          %590 = vmatpush1.msra.mxu0 %v561
          %591 = vmatprep.subr.mxu0 0.0
          %592 = vmatpush1.msra.mxu0 %v560
          %593 = vmatprep.subr.mxu0 0.0
          %594 = vmatpush1.msra.mxu0 %v559
          %595 = vmatprep.subr.mxu0 0.0
          %596 = vmatpush1.msra.mxu0 %v558
          %597 = vmatprep.subr.mxu0 0.0
          %598 = vmatpush2.msra.mxu0 0.0
          %599 = vmatprep.subr.mxu0 0.0
          %600 = vmatpush2.msra.mxu0 0.0
          %601 = vmatprep.subr.mxu0 0.0
          %602 = vmatpush2.msra.mxu0 0.0
          %603 = vmatprep.subr.mxu0 0.0
          %604 = vmatpush2.msra.mxu0 0.0
          %605 = vmatprep.subr.mxu0 0.0
          %606 = vmatpush2.msra.mxu0 0.0
          %607 = vmatprep.subr.mxu0 0.0
          %608 = vmatpush2.msra.mxu0 0.0
          %609 = vmatprep.subr.mxu0 0.0
          %610 = vmatpush2.msra.mxu0 0.0
          %611 = vmatprep.subr.mxu0 0.0
          %612 = vmatpush2.msra.mxu0 0.0
          %613 = vmatprep.subr.mxu0 0.0
          %614 = vmatpush2.msra.mxu0 0.0
          %615 = vmatprep.subr.mxu0 0.0
          %616 = vmatpush2.msra.mxu0 0.0
          %617 = vmatprep.subr.mxu0 0.0
          %618 = vmatpush2.msra.mxu0 0.0
          %619 = vmatprep.subr.mxu0 0.0
          %620 = vmatpush2.msra.mxu0 0.0
          %621 = vmatprep.subr.mxu0 0.0
          %622 = vmatpush2.msra.mxu0 0.0
          %623 = vmatprep.subr.mxu0 0.0
          %624 = vmatpush2.msra.mxu0 0.0
          %625 = vmatprep.subr.mxu0 0.0
          %626 = vmatpush2.msra.mxu0 0.0
          %627 = vmatprep.subr.mxu0 0.0
          %628 = vmatpush2.msra.mxu0 0.0
          %629 = vmatprep.mubr.f32.mxu0 0.0
          %630 = vmatmul.mubr.f32.gmra.mxu0 %v563
          %v631 = vpop.f32.mrf.mxu0
          %v632 = vadd.f32 0.0, %v631
          %v633 = vpop.f32.mrf.mxu0
          %634 = vdwg.mxu0
          %635 = vst.msk [vmem:[#allocation3] sm:$0xff] %vm556, %v632
          %s636 = scalar_lea.vmem %s4, 32
          %v637 = vld [vmem:[%s636] sm:$0xff]
          %v638 = vld [vmem:[%s636 + $0x8] sm:$0xff]
          %v639 = vld [vmem:[%s636 + $0x10] sm:$0xff]
          %v640 = vld [vmem:[%s636 + $0x18] sm:$0xff]
          %641 = vmatprep.subr.mxu0 0.0
          %642 = vmatpush1.msra.mxu0 0.0
          %643 = vmatprep.subr.mxu0 0.0
          %644 = vmatpush1.msra.mxu0 0.0
          %645 = vmatprep.subr.mxu0 0.0
          %646 = vmatpush1.msra.mxu0 0.0
          %647 = vmatprep.subr.mxu0 0.0
          %648 = vmatpush1.msra.mxu0 0.0
          %649 = vmatprep.subr.mxu0 0.0
          %650 = vmatpush1.msra.mxu0 0.0
          %651 = vmatprep.subr.mxu0 0.0
          %652 = vmatpush1.msra.mxu0 0.0
          %653 = vmatprep.subr.mxu0 0.0
          %654 = vmatpush1.msra.mxu0 0.0
          %655 = vmatprep.subr.mxu0 0.0
          %656 = vmatpush1.msra.mxu0 0.0
          %657 = vmatprep.subr.mxu0 0.0
          %658 = vmatpush1.msra.mxu0 0.0
          %659 = vmatprep.subr.mxu0 0.0
          %660 = vmatpush1.msra.mxu0 0.0
          %661 = vmatprep.subr.mxu0 0.0
          %662 = vmatpush1.msra.mxu0 0.0
          %663 = vmatprep.subr.mxu0 0.0
          %664 = vmatpush1.msra.mxu0 0.0
          %665 = vmatprep.subr.mxu0 0.0
          %666 = vmatpush1.msra.mxu0 %v640
          %667 = vmatprep.subr.mxu0 0.0
          %668 = vmatpush1.msra.mxu0 %v639
          %669 = vmatprep.subr.mxu0 0.0
          %670 = vmatpush1.msra.mxu0 %v638
          %671 = vmatprep.subr.mxu0 0.0
          %672 = vmatpush1.msra.mxu0 %v637
          %673 = vmatprep.subr.mxu0 0.0
          %674 = vmatpush2.msra.mxu0 0.0
          %675 = vmatprep.subr.mxu0 0.0
          %676 = vmatpush2.msra.mxu0 0.0
          %677 = vmatprep.subr.mxu0 0.0
          %678 = vmatpush2.msra.mxu0 0.0
          %679 = vmatprep.subr.mxu0 0.0
          %680 = vmatpush2.msra.mxu0 0.0
          %681 = vmatprep.subr.mxu0 0.0
          %682 = vmatpush2.msra.mxu0 0.0
          %683 = vmatprep.subr.mxu0 0.0
          %684 = vmatpush2.msra.mxu0 0.0
          %685 = vmatprep.subr.mxu0 0.0
          %686 = vmatpush2.msra.mxu0 0.0
          %687 = vmatprep.subr.mxu0 0.0
          %688 = vmatpush2.msra.mxu0 0.0
          %689 = vmatprep.subr.mxu0 0.0
          %690 = vmatpush2.msra.mxu0 0.0
          %691 = vmatprep.subr.mxu0 0.0
          %692 = vmatpush2.msra.mxu0 0.0
          %693 = vmatprep.subr.mxu0 0.0
          %694 = vmatpush2.msra.mxu0 0.0
          %695 = vmatprep.subr.mxu0 0.0
          %696 = vmatpush2.msra.mxu0 0.0
          %697 = vmatprep.subr.mxu0 0.0
          %698 = vmatpush2.msra.mxu0 0.0
          %699 = vmatprep.subr.mxu0 0.0
          %700 = vmatpush2.msra.mxu0 0.0
          %701 = vmatprep.subr.mxu0 0.0
          %702 = vmatpush2.msra.mxu0 0.0
          %703 = vmatprep.subr.mxu0 0.0
          %704 = vmatpush2.msra.mxu0 0.0
          %705 = vmatprep.mubr.f32.mxu0 0.0
          %706 = vmatmul.mubr.f32.gmra.mxu0 %v484
          %v707 = vpop.f32.mrf.mxu0
          %v708 = vadd.f32 0.0, %v707
          %v709 = vpop.f32.mrf.mxu0
          %710 = vdwg.mxu0
          %s711 = scalar_lea.vmem [#allocation2], 8
          %712 = vst.msk [vmem:[%s711] sm:$0xff] %vm556, %v708
          %s713 = scalar_lea.vmem %s5, 32
          %v714 = vld [vmem:[%s713] sm:$0xff]
          %v715 = vld [vmem:[%s713 + $0x8] sm:$0xff]
          %v716 = vld [vmem:[%s713 + $0x10] sm:$0xff]
          %v717 = vld [vmem:[%s713 + $0x18] sm:$0xff]
          %718 = vmatprep.subr.mxu0 0.0
          %719 = vmatpush1.msra.mxu0 0.0
          %720 = vmatprep.subr.mxu0 0.0
          %721 = vmatpush1.msra.mxu0 0.0
          %722 = vmatprep.subr.mxu0 0.0
          %723 = vmatpush1.msra.mxu0 0.0
          %724 = vmatprep.subr.mxu0 0.0
          %725 = vmatpush1.msra.mxu0 0.0
          %726 = vmatprep.subr.mxu0 0.0
          %727 = vmatpush1.msra.mxu0 0.0
          %728 = vmatprep.subr.mxu0 0.0
          %729 = vmatpush1.msra.mxu0 0.0
          %730 = vmatprep.subr.mxu0 0.0
          %731 = vmatpush1.msra.mxu0 0.0
          %732 = vmatprep.subr.mxu0 0.0
          %733 = vmatpush1.msra.mxu0 0.0
          %734 = vmatprep.subr.mxu0 0.0
          %735 = vmatpush1.msra.mxu0 0.0
          %736 = vmatprep.subr.mxu0 0.0
          %737 = vmatpush1.msra.mxu0 0.0
          %738 = vmatprep.subr.mxu0 0.0
          %739 = vmatpush1.msra.mxu0 0.0
          %740 = vmatprep.subr.mxu0 0.0
          %741 = vmatpush1.msra.mxu0 0.0
          %742 = vmatprep.subr.mxu0 0.0
          %743 = vmatpush1.msra.mxu0 %v717
          %744 = vmatprep.subr.mxu0 0.0
          %745 = vmatpush1.msra.mxu0 %v716
          %746 = vmatprep.subr.mxu0 0.0
          %747 = vmatpush1.msra.mxu0 %v715
          %748 = vmatprep.subr.mxu0 0.0
          %749 = vmatpush1.msra.mxu0 %v714
          %750 = vmatprep.subr.mxu0 0.0
          %751 = vmatpush2.msra.mxu0 0.0
          %752 = vmatprep.subr.mxu0 0.0
          %753 = vmatpush2.msra.mxu0 0.0
          %754 = vmatprep.subr.mxu0 0.0
          %755 = vmatpush2.msra.mxu0 0.0
          %756 = vmatprep.subr.mxu0 0.0
          %757 = vmatpush2.msra.mxu0 0.0
          %758 = vmatprep.subr.mxu0 0.0
          %759 = vmatpush2.msra.mxu0 0.0
          %760 = vmatprep.subr.mxu0 0.0
          %761 = vmatpush2.msra.mxu0 0.0
          %762 = vmatprep.subr.mxu0 0.0
          %763 = vmatpush2.msra.mxu0 0.0
          %764 = vmatprep.subr.mxu0 0.0
          %765 = vmatpush2.msra.mxu0 0.0
          %766 = vmatprep.subr.mxu0 0.0
          %767 = vmatpush2.msra.mxu0 0.0
          %768 = vmatprep.subr.mxu0 0.0
          %769 = vmatpush2.msra.mxu0 0.0
          %770 = vmatprep.subr.mxu0 0.0
          %771 = vmatpush2.msra.mxu0 0.0
          %772 = vmatprep.subr.mxu0 0.0
          %773 = vmatpush2.msra.mxu0 0.0
          %774 = vmatprep.subr.mxu0 0.0
          %775 = vmatpush2.msra.mxu0 0.0
          %776 = vmatprep.subr.mxu0 0.0
          %777 = vmatpush2.msra.mxu0 0.0
          %778 = vmatprep.subr.mxu0 0.0
          %779 = vmatpush2.msra.mxu0 0.0
          %780 = vmatprep.subr.mxu0 0.0
          %781 = vmatpush2.msra.mxu0 0.0
          %782 = vmatprep.mubr.f32.mxu0 0.0
          %783 = vmatmul.mubr.f32.gmra.mxu0 %v563
          %v784 = vpop.f32.mrf.mxu0
          %v785 = vadd.f32 0.0, %v784
          %v786 = vpop.f32.mrf.mxu0
          %787 = vdwg.mxu0
          %s788 = scalar_lea.vmem [#allocation3], 8
          %789 = vst.msk [vmem:[%s788] sm:$0xff] %vm556, %v785
          %s790 = scalar_lea.vmem %s4, 64
          %v791 = vld [vmem:[%s790] sm:$0xff]
          %v792 = vld [vmem:[%s790 + $0x8] sm:$0xff]
          %v793 = vld [vmem:[%s790 + $0x10] sm:$0xff]
          %v794 = vld [vmem:[%s790 + $0x18] sm:$0xff]
          %795 = vmatprep.subr.mxu0 0.0
          %796 = vmatpush1.msra.mxu0 0.0
          %797 = vmatprep.subr.mxu0 0.0
          %798 = vmatpush1.msra.mxu0 0.0
          %799 = vmatprep.subr.mxu0 0.0
          %800 = vmatpush1.msra.mxu0 0.0
          %801 = vmatprep.subr.mxu0 0.0
          %802 = vmatpush1.msra.mxu0 0.0
          %803 = vmatprep.subr.mxu0 0.0
          %804 = vmatpush1.msra.mxu0 0.0
          %805 = vmatprep.subr.mxu0 0.0
          %806 = vmatpush1.msra.mxu0 0.0
          %807 = vmatprep.subr.mxu0 0.0
          %808 = vmatpush1.msra.mxu0 0.0
          %809 = vmatprep.subr.mxu0 0.0
          %810 = vmatpush1.msra.mxu0 0.0
          %811 = vmatprep.subr.mxu0 0.0
          %812 = vmatpush1.msra.mxu0 0.0
          %813 = vmatprep.subr.mxu0 0.0
          %814 = vmatpush1.msra.mxu0 0.0
          %815 = vmatprep.subr.mxu0 0.0
          %816 = vmatpush1.msra.mxu0 0.0
          %817 = vmatprep.subr.mxu0 0.0
          %818 = vmatpush1.msra.mxu0 0.0
          %819 = vmatprep.subr.mxu0 0.0
          %820 = vmatpush1.msra.mxu0 %v794
          %821 = vmatprep.subr.mxu0 0.0
          %822 = vmatpush1.msra.mxu0 %v793
          %823 = vmatprep.subr.mxu0 0.0
          %824 = vmatpush1.msra.mxu0 %v792
          %825 = vmatprep.subr.mxu0 0.0
          %826 = vmatpush1.msra.mxu0 %v791
          %827 = vmatprep.subr.mxu0 0.0
          %828 = vmatpush2.msra.mxu0 0.0
          %829 = vmatprep.subr.mxu0 0.0
          %830 = vmatpush2.msra.mxu0 0.0
          %831 = vmatprep.subr.mxu0 0.0
          %832 = vmatpush2.msra.mxu0 0.0
          %833 = vmatprep.subr.mxu0 0.0
          %834 = vmatpush2.msra.mxu0 0.0
          %835 = vmatprep.subr.mxu0 0.0
          %836 = vmatpush2.msra.mxu0 0.0
          %837 = vmatprep.subr.mxu0 0.0
          %838 = vmatpush2.msra.mxu0 0.0
          %839 = vmatprep.subr.mxu0 0.0
          %840 = vmatpush2.msra.mxu0 0.0
          %841 = vmatprep.subr.mxu0 0.0
          %842 = vmatpush2.msra.mxu0 0.0
          %843 = vmatprep.subr.mxu0 0.0
          %844 = vmatpush2.msra.mxu0 0.0
          %845 = vmatprep.subr.mxu0 0.0
          %846 = vmatpush2.msra.mxu0 0.0
          %847 = vmatprep.subr.mxu0 0.0
          %848 = vmatpush2.msra.mxu0 0.0
          %849 = vmatprep.subr.mxu0 0.0
          %850 = vmatpush2.msra.mxu0 0.0
          %851 = vmatprep.subr.mxu0 0.0
          %852 = vmatpush2.msra.mxu0 0.0
          %853 = vmatprep.subr.mxu0 0.0
          %854 = vmatpush2.msra.mxu0 0.0
          %855 = vmatprep.subr.mxu0 0.0
          %856 = vmatpush2.msra.mxu0 0.0
          %857 = vmatprep.subr.mxu0 0.0
          %858 = vmatpush2.msra.mxu0 0.0
          %859 = vmatprep.mubr.f32.mxu0 0.0
          %860 = vmatmul.mubr.f32.gmra.mxu0 %v484
          %v861 = vpop.f32.mrf.mxu0
          %v862 = vadd.f32 0.0, %v861
          %v863 = vpop.f32.mrf.mxu0
          %864 = vdwg.mxu0
          %s865 = scalar_lea.vmem [#allocation2], 16
          %866 = vst.msk [vmem:[%s865] sm:$0xff] %vm556, %v862
          %s867 = scalar_lea.vmem %s5, 64
          %v868 = vld [vmem:[%s867] sm:$0xff]
          %v869 = vld [vmem:[%s867 + $0x8] sm:$0xff]
          %v870 = vld [vmem:[%s867 + $0x10] sm:$0xff]
          %v871 = vld [vmem:[%s867 + $0x18] sm:$0xff]
          %872 = vmatprep.subr.mxu0 0.0
          %873 = vmatpush1.msra.mxu0 0.0
          %874 = vmatprep.subr.mxu0 0.0
          %875 = vmatpush1.msra.mxu0 0.0
          %876 = vmatprep.subr.mxu0 0.0
          %877 = vmatpush1.msra.mxu0 0.0
          %878 = vmatprep.subr.mxu0 0.0
          %879 = vmatpush1.msra.mxu0 0.0
          %880 = vmatprep.subr.mxu0 0.0
          %881 = vmatpush1.msra.mxu0 0.0
          %882 = vmatprep.subr.mxu0 0.0
          %883 = vmatpush1.msra.mxu0 0.0
          %884 = vmatprep.subr.mxu0 0.0
          %885 = vmatpush1.msra.mxu0 0.0
          %886 = vmatprep.subr.mxu0 0.0
          %887 = vmatpush1.msra.mxu0 0.0
          %888 = vmatprep.subr.mxu0 0.0
          %889 = vmatpush1.msra.mxu0 0.0
          %890 = vmatprep.subr.mxu0 0.0
          %891 = vmatpush1.msra.mxu0 0.0
          %892 = vmatprep.subr.mxu0 0.0
          %893 = vmatpush1.msra.mxu0 0.0
          %894 = vmatprep.subr.mxu0 0.0
          %895 = vmatpush1.msra.mxu0 0.0
          %896 = vmatprep.subr.mxu0 0.0
          %897 = vmatpush1.msra.mxu0 %v871
          %898 = vmatprep.subr.mxu0 0.0
          %899 = vmatpush1.msra.mxu0 %v870
          %900 = vmatprep.subr.mxu0 0.0
          %901 = vmatpush1.msra.mxu0 %v869
          %902 = vmatprep.subr.mxu0 0.0
          %903 = vmatpush1.msra.mxu0 %v868
          %904 = vmatprep.subr.mxu0 0.0
          %905 = vmatpush2.msra.mxu0 0.0
          %906 = vmatprep.subr.mxu0 0.0
          %907 = vmatpush2.msra.mxu0 0.0
          %908 = vmatprep.subr.mxu0 0.0
          %909 = vmatpush2.msra.mxu0 0.0
          %910 = vmatprep.subr.mxu0 0.0
          %911 = vmatpush2.msra.mxu0 0.0
          %912 = vmatprep.subr.mxu0 0.0
          %913 = vmatpush2.msra.mxu0 0.0
          %914 = vmatprep.subr.mxu0 0.0
          %915 = vmatpush2.msra.mxu0 0.0
          %916 = vmatprep.subr.mxu0 0.0
          %917 = vmatpush2.msra.mxu0 0.0
          %918 = vmatprep.subr.mxu0 0.0
          %919 = vmatpush2.msra.mxu0 0.0
          %920 = vmatprep.subr.mxu0 0.0
          %921 = vmatpush2.msra.mxu0 0.0
          %922 = vmatprep.subr.mxu0 0.0
          %923 = vmatpush2.msra.mxu0 0.0
          %924 = vmatprep.subr.mxu0 0.0
          %925 = vmatpush2.msra.mxu0 0.0
          %926 = vmatprep.subr.mxu0 0.0
          %927 = vmatpush2.msra.mxu0 0.0
          %928 = vmatprep.subr.mxu0 0.0
          %929 = vmatpush2.msra.mxu0 0.0
          %930 = vmatprep.subr.mxu0 0.0
          %931 = vmatpush2.msra.mxu0 0.0
          %932 = vmatprep.subr.mxu0 0.0
          %933 = vmatpush2.msra.mxu0 0.0
          %934 = vmatprep.subr.mxu0 0.0
          %935 = vmatpush2.msra.mxu0 0.0
          %936 = vmatprep.mubr.f32.mxu0 0.0
          %937 = vmatmul.mubr.f32.gmra.mxu0 %v563
          %v938 = vpop.f32.mrf.mxu0
          %v939 = vadd.f32 0.0, %v938
          %v940 = vpop.f32.mrf.mxu0
          %941 = vdwg.mxu0
          %s942 = scalar_lea.vmem [#allocation3], 16
          %943 = vst.msk [vmem:[%s942] sm:$0xff] %vm556, %v939
          %s944 = scalar_lea.vmem %s4, 96
          %v945 = vld [vmem:[%s944] sm:$0xff]
          %v946 = vld [vmem:[%s944 + $0x8] sm:$0xff]
          %v947 = vld [vmem:[%s944 + $0x10] sm:$0xff]
          %v948 = vld [vmem:[%s944 + $0x18] sm:$0xff]
          %949 = vmatprep.subr.mxu0 0.0
          %950 = vmatpush1.msra.mxu0 0.0
          %951 = vmatprep.subr.mxu0 0.0
          %952 = vmatpush1.msra.mxu0 0.0
          %953 = vmatprep.subr.mxu0 0.0
          %954 = vmatpush1.msra.mxu0 0.0
          %955 = vmatprep.subr.mxu0 0.0
          %956 = vmatpush1.msra.mxu0 0.0
          %957 = vmatprep.subr.mxu0 0.0
          %958 = vmatpush1.msra.mxu0 0.0
          %959 = vmatprep.subr.mxu0 0.0
          %960 = vmatpush1.msra.mxu0 0.0
          %961 = vmatprep.subr.mxu0 0.0
          %962 = vmatpush1.msra.mxu0 0.0
          %963 = vmatprep.subr.mxu0 0.0
          %964 = vmatpush1.msra.mxu0 0.0
          %965 = vmatprep.subr.mxu0 0.0
          %966 = vmatpush1.msra.mxu0 0.0
          %967 = vmatprep.subr.mxu0 0.0
          %968 = vmatpush1.msra.mxu0 0.0
          %969 = vmatprep.subr.mxu0 0.0
          %970 = vmatpush1.msra.mxu0 0.0
          %971 = vmatprep.subr.mxu0 0.0
          %972 = vmatpush1.msra.mxu0 0.0
          %973 = vmatprep.subr.mxu0 0.0
          %974 = vmatpush1.msra.mxu0 %v948
          %975 = vmatprep.subr.mxu0 0.0
          %976 = vmatpush1.msra.mxu0 %v947
          %977 = vmatprep.subr.mxu0 0.0
          %978 = vmatpush1.msra.mxu0 %v946
          %979 = vmatprep.subr.mxu0 0.0
          %980 = vmatpush1.msra.mxu0 %v945
          %981 = vmatprep.subr.mxu0 0.0
          %982 = vmatpush2.msra.mxu0 0.0
          %983 = vmatprep.subr.mxu0 0.0
          %984 = vmatpush2.msra.mxu0 0.0
          %985 = vmatprep.subr.mxu0 0.0
          %986 = vmatpush2.msra.mxu0 0.0
          %987 = vmatprep.subr.mxu0 0.0
          %988 = vmatpush2.msra.mxu0 0.0
          %989 = vmatprep.subr.mxu0 0.0
          %990 = vmatpush2.msra.mxu0 0.0
          %991 = vmatprep.subr.mxu0 0.0
          %992 = vmatpush2.msra.mxu0 0.0
          %993 = vmatprep.subr.mxu0 0.0
          %994 = vmatpush2.msra.mxu0 0.0
          %995 = vmatprep.subr.mxu0 0.0
          %996 = vmatpush2.msra.mxu0 0.0
          %997 = vmatprep.subr.mxu0 0.0
          %998 = vmatpush2.msra.mxu0 0.0
          %999 = vmatprep.subr.mxu0 0.0
          %1000 = vmatpush2.msra.mxu0 0.0
          %1001 = vmatprep.subr.mxu0 0.0
          %1002 = vmatpush2.msra.mxu0 0.0
          %1003 = vmatprep.subr.mxu0 0.0
          %1004 = vmatpush2.msra.mxu0 0.0
          %1005 = vmatprep.subr.mxu0 0.0
          %1006 = vmatpush2.msra.mxu0 0.0
          %1007 = vmatprep.subr.mxu0 0.0
          %1008 = vmatpush2.msra.mxu0 0.0
          %1009 = vmatprep.subr.mxu0 0.0
          %1010 = vmatpush2.msra.mxu0 0.0
          %1011 = vmatprep.subr.mxu0 0.0
          %1012 = vmatpush2.msra.mxu0 0.0
          %1013 = vmatprep.mubr.f32.mxu0 0.0
          %1014 = vmatmul.mubr.f32.gmra.mxu0 %v484
          %v1015 = vpop.f32.mrf.mxu0
          %v1016 = vadd.f32 0.0, %v1015
          %v1017 = vpop.f32.mrf.mxu0
          %1018 = vdwg.mxu0
          %s1019 = scalar_lea.vmem [#allocation2], 24
          %1020 = vst.msk [vmem:[%s1019] sm:$0xff] %vm556, %v1016
          %s1021 = scalar_lea.vmem %s5, 96
          %v1022 = vld [vmem:[%s1021] sm:$0xff]
          %v1023 = vld [vmem:[%s1021 + $0x8] sm:$0xff]
          %v1024 = vld [vmem:[%s1021 + $0x10] sm:$0xff]
          %v1025 = vld [vmem:[%s1021 + $0x18] sm:$0xff]
          %1026 = vmatprep.subr.mxu0 0.0
          %1027 = vmatpush1.msra.mxu0 0.0
          %1028 = vmatprep.subr.mxu0 0.0
          %1029 = vmatpush1.msra.mxu0 0.0
          %1030 = vmatprep.subr.mxu0 0.0
          %1031 = vmatpush1.msra.mxu0 0.0
          %1032 = vmatprep.subr.mxu0 0.0
          %1033 = vmatpush1.msra.mxu0 0.0
          %1034 = vmatprep.subr.mxu0 0.0
          %1035 = vmatpush1.msra.mxu0 0.0
          %1036 = vmatprep.subr.mxu0 0.0
          %1037 = vmatpush1.msra.mxu0 0.0
          %1038 = vmatprep.subr.mxu0 0.0
          %1039 = vmatpush1.msra.mxu0 0.0
          %1040 = vmatprep.subr.mxu0 0.0
          %1041 = vmatpush1.msra.mxu0 0.0
          %1042 = vmatprep.subr.mxu0 0.0
          %1043 = vmatpush1.msra.mxu0 0.0
          %1044 = vmatprep.subr.mxu0 0.0
          %1045 = vmatpush1.msra.mxu0 0.0
          %1046 = vmatprep.subr.mxu0 0.0
          %1047 = vmatpush1.msra.mxu0 0.0
          %1048 = vmatprep.subr.mxu0 0.0
          %1049 = vmatpush1.msra.mxu0 0.0
          %1050 = vmatprep.subr.mxu0 0.0
          %1051 = vmatpush1.msra.mxu0 %v1025
          %1052 = vmatprep.subr.mxu0 0.0
          %1053 = vmatpush1.msra.mxu0 %v1024
          %1054 = vmatprep.subr.mxu0 0.0
          %1055 = vmatpush1.msra.mxu0 %v1023
          %1056 = vmatprep.subr.mxu0 0.0
          %1057 = vmatpush1.msra.mxu0 %v1022
          %1058 = vmatprep.subr.mxu0 0.0
          %1059 = vmatpush2.msra.mxu0 0.0
          %1060 = vmatprep.subr.mxu0 0.0
          %1061 = vmatpush2.msra.mxu0 0.0
          %1062 = vmatprep.subr.mxu0 0.0
          %1063 = vmatpush2.msra.mxu0 0.0
          %1064 = vmatprep.subr.mxu0 0.0
          %1065 = vmatpush2.msra.mxu0 0.0
          %1066 = vmatprep.subr.mxu0 0.0
          %1067 = vmatpush2.msra.mxu0 0.0
          %1068 = vmatprep.subr.mxu0 0.0
          %1069 = vmatpush2.msra.mxu0 0.0
          %1070 = vmatprep.subr.mxu0 0.0
          %1071 = vmatpush2.msra.mxu0 0.0
          %1072 = vmatprep.subr.mxu0 0.0
          %1073 = vmatpush2.msra.mxu0 0.0
          %1074 = vmatprep.subr.mxu0 0.0
          %1075 = vmatpush2.msra.mxu0 0.0
          %1076 = vmatprep.subr.mxu0 0.0
          %1077 = vmatpush2.msra.mxu0 0.0
          %1078 = vmatprep.subr.mxu0 0.0
          %1079 = vmatpush2.msra.mxu0 0.0
          %1080 = vmatprep.subr.mxu0 0.0
          %1081 = vmatpush2.msra.mxu0 0.0
          %1082 = vmatprep.subr.mxu0 0.0
          %1083 = vmatpush2.msra.mxu0 0.0
          %1084 = vmatprep.subr.mxu0 0.0
          %1085 = vmatpush2.msra.mxu0 0.0
          %1086 = vmatprep.subr.mxu0 0.0
          %1087 = vmatpush2.msra.mxu0 0.0
          %1088 = vmatprep.subr.mxu0 0.0
          %1089 = vmatpush2.msra.mxu0 0.0
          %1090 = vmatprep.mubr.f32.mxu0 0.0
          %1091 = vmatmul.mubr.f32.gmra.mxu0 %v563
          %v1092 = vpop.f32.mrf.mxu0
          %v1093 = vadd.f32 0.0, %v1092
          %v1094 = vpop.f32.mrf.mxu0
          %1095 = vdwg.mxu0
          %s1096 = scalar_lea.vmem [#allocation3], 24
          %1097 = vst.msk [vmem:[%s1096] sm:$0xff] %vm556, %v1093
        $region60: #{tpu_custom_call.1} parent=55 // pred_fallthru
          _
        %v1098 = vld [vmem:[%s418] sm:$0xff]
        %vm1099 = vcmask 261120
        %v1100 = vsel %vm1099, %v1098, 0.0
        %1101 = vadd.xlane.f32.xlu0 %v1100
        %v1102 = vpop.xlane.xlu0 %1101
        %v1103 = vrcp.pop 32.0
        %v1104 = vmul.f32 %v1102, %v1103
        %v1105 = vsub.f32 %v1098, %v1104
        %v1106 = vmul.f32 %v1105, %v1105
        %v1107 = vsel %vm1099, %v1106, 0.0
        %1108 = vadd.xlane.f32.xlu0 %v1107
        %v1109 = vpop.xlane.xlu0 %1108
        %v1110 = vmul.f32 %v1109, %v1103
        %v1111 = vadd.f32 %v1110, 1e-06
        %v1112 = vrsqrt.pop %v1111
        %v1113 = vmul.f32 %v1105, %v1112
        %v1115 = vlaneseq
        %v1116 = vshrl.u32 %v1115, 7
        %v1117 = vsub.s32 0, %v1116
        %v1118 = vrot.slane %v427, %v1117
        %v1120 = vmul.f32 %v1113, %v1118
        %v1122 = vlaneseq
        %v1123 = vshrl.u32 %v1122, 7
        %v1124 = vsub.s32 0, %v1123
        %v1125 = vrot.slane %v428, %v1124
        %v1127 = vadd.f32 %v1120, %v1125
        %v1128 = vld [vmem:[%s3] sm:$0xff]
        %v1129 = vld [vmem:[%s3 + $0x8] sm:$0xff]
        %v1130 = vld [vmem:[%s3 + $0x10] sm:$0xff]
        %v1131 = vld [vmem:[%s3 + $0x18] sm:$0xff]
        %v1133 = vsel %vm1099, %v1127, 0
        %1135 = vmatprep.subr.mxu0 0.0
        %1136 = vmatpush1.msra.mxu0 0.0
        %1137 = vmatprep.subr.mxu0 0.0
        %1138 = vmatpush1.msra.mxu0 0.0
        %1139 = vmatprep.subr.mxu0 0.0
        %1140 = vmatpush1.msra.mxu0 0.0
        %1141 = vmatprep.subr.mxu0 0.0
        %1142 = vmatpush1.msra.mxu0 0.0
        %1143 = vmatprep.subr.mxu0 0.0
        %1144 = vmatpush1.msra.mxu0 0.0
        %1145 = vmatprep.subr.mxu0 0.0
        %1146 = vmatpush1.msra.mxu0 0.0
        %1147 = vmatprep.subr.mxu0 0.0
        %1148 = vmatpush1.msra.mxu0 0.0
        %1149 = vmatprep.subr.mxu0 0.0
        %1150 = vmatpush1.msra.mxu0 0.0
        %1151 = vmatprep.subr.mxu0 0.0
        %1152 = vmatpush1.msra.mxu0 0.0
        %1153 = vmatprep.subr.mxu0 0.0
        %1154 = vmatpush1.msra.mxu0 0.0
        %1155 = vmatprep.subr.mxu0 0.0
        %1156 = vmatpush1.msra.mxu0 0.0
        %1157 = vmatprep.subr.mxu0 0.0
        %1158 = vmatpush1.msra.mxu0 0.0
        %1159 = vmatprep.subr.mxu0 0.0
        %1160 = vmatpush1.msra.mxu0 %v1131
        %1161 = vmatprep.subr.mxu0 0.0
        %1162 = vmatpush1.msra.mxu0 %v1130
        %1163 = vmatprep.subr.mxu0 0.0
        %1164 = vmatpush1.msra.mxu0 %v1129
        %1165 = vmatprep.subr.mxu0 0.0
        %1166 = vmatpush1.msra.mxu0 %v1128
        %1167 = vmatprep.subr.mxu0 0.0
        %1168 = vmatpush2.msra.mxu0 0.0
        %1169 = vmatprep.subr.mxu0 0.0
        %1170 = vmatpush2.msra.mxu0 0.0
        %1171 = vmatprep.subr.mxu0 0.0
        %1172 = vmatpush2.msra.mxu0 0.0
        %1173 = vmatprep.subr.mxu0 0.0
        %1174 = vmatpush2.msra.mxu0 0.0
        %1175 = vmatprep.subr.mxu0 0.0
        %1176 = vmatpush2.msra.mxu0 0.0
        %1177 = vmatprep.subr.mxu0 0.0
        %1178 = vmatpush2.msra.mxu0 0.0
        %1179 = vmatprep.subr.mxu0 0.0
        %1180 = vmatpush2.msra.mxu0 0.0
        %1181 = vmatprep.subr.mxu0 0.0
        %1182 = vmatpush2.msra.mxu0 0.0
        %1183 = vmatprep.subr.mxu0 0.0
        %1184 = vmatpush2.msra.mxu0 0.0
        %1185 = vmatprep.subr.mxu0 0.0
        %1186 = vmatpush2.msra.mxu0 0.0
        %1187 = vmatprep.subr.mxu0 0.0
        %1188 = vmatpush2.msra.mxu0 0.0
        %1189 = vmatprep.subr.mxu0 0.0
        %1190 = vmatpush2.msra.mxu0 0.0
        %1191 = vmatprep.subr.mxu0 0.0
        %1192 = vmatpush2.msra.mxu0 0.0
        %1193 = vmatprep.subr.mxu0 0.0
        %1194 = vmatpush2.msra.mxu0 0.0
        %1195 = vmatprep.subr.mxu0 0.0
        %1196 = vmatpush2.msra.mxu0 0.0
        %1197 = vmatprep.subr.mxu0 0.0
        %1198 = vmatpush2.msra.mxu0 0.0
        %1199 = vmatprep.mubr.f32.mxu0 0.0
        %1200 = vmatmul.mubr.f32.gmra.mxu0 %v1133
        %v1201 = vpop.f32.mrf.mxu0
        %v1202 = vadd.f32 0.0, %v1201
        %v1203 = vpop.f32.mrf.mxu0
        %1204 = vdwg.mxu0
        %s1205 = scalar_lea.vmem %s3, 32
        %v1206 = vld [vmem:[%s1205] sm:$0xff]
        %v1207 = vld [vmem:[%s1205 + $0x8] sm:$0xff]
        %v1208 = vld [vmem:[%s1205 + $0x10] sm:$0xff]
        %v1209 = vld [vmem:[%s1205 + $0x18] sm:$0xff]
        %1210 = vmatprep.subr.mxu0 0.0
        %1211 = vmatpush1.msra.mxu0 0.0
        %1212 = vmatprep.subr.mxu0 0.0
        %1213 = vmatpush1.msra.mxu0 0.0
        %1214 = vmatprep.subr.mxu0 0.0
        %1215 = vmatpush1.msra.mxu0 0.0
        %1216 = vmatprep.subr.mxu0 0.0
        %1217 = vmatpush1.msra.mxu0 0.0
        %1218 = vmatprep.subr.mxu0 0.0
        %1219 = vmatpush1.msra.mxu0 0.0
        %1220 = vmatprep.subr.mxu0 0.0
        %1221 = vmatpush1.msra.mxu0 0.0
        %1222 = vmatprep.subr.mxu0 0.0
        %1223 = vmatpush1.msra.mxu0 0.0
        %1224 = vmatprep.subr.mxu0 0.0
        %1225 = vmatpush1.msra.mxu0 0.0
        %1226 = vmatprep.subr.mxu0 0.0
        %1227 = vmatpush1.msra.mxu0 0.0
        %1228 = vmatprep.subr.mxu0 0.0
        %1229 = vmatpush1.msra.mxu0 0.0
        %1230 = vmatprep.subr.mxu0 0.0
        %1231 = vmatpush1.msra.mxu0 0.0
        %1232 = vmatprep.subr.mxu0 0.0
        %1233 = vmatpush1.msra.mxu0 0.0
        %1234 = vmatprep.subr.mxu0 0.0
        %1235 = vmatpush1.msra.mxu0 %v1209
        %1236 = vmatprep.subr.mxu0 0.0
        %1237 = vmatpush1.msra.mxu0 %v1208
        %1238 = vmatprep.subr.mxu0 0.0
        %1239 = vmatpush1.msra.mxu0 %v1207
        %1240 = vmatprep.subr.mxu0 0.0
        %1241 = vmatpush1.msra.mxu0 %v1206
        %1242 = vmatprep.subr.mxu0 0.0
        %1243 = vmatpush2.msra.mxu0 0.0
        %1244 = vmatprep.subr.mxu0 0.0
        %1245 = vmatpush2.msra.mxu0 0.0
        %1246 = vmatprep.subr.mxu0 0.0
        %1247 = vmatpush2.msra.mxu0 0.0
        %1248 = vmatprep.subr.mxu0 0.0
        %1249 = vmatpush2.msra.mxu0 0.0
        %1250 = vmatprep.subr.mxu0 0.0
        %1251 = vmatpush2.msra.mxu0 0.0
        %1252 = vmatprep.subr.mxu0 0.0
        %1253 = vmatpush2.msra.mxu0 0.0
        %1254 = vmatprep.subr.mxu0 0.0
        %1255 = vmatpush2.msra.mxu0 0.0
        %1256 = vmatprep.subr.mxu0 0.0
        %1257 = vmatpush2.msra.mxu0 0.0
        %1258 = vmatprep.subr.mxu0 0.0
        %1259 = vmatpush2.msra.mxu0 0.0
        %1260 = vmatprep.subr.mxu0 0.0
        %1261 = vmatpush2.msra.mxu0 0.0
        %1262 = vmatprep.subr.mxu0 0.0
        %1263 = vmatpush2.msra.mxu0 0.0
        %1264 = vmatprep.subr.mxu0 0.0
        %1265 = vmatpush2.msra.mxu0 0.0
        %1266 = vmatprep.subr.mxu0 0.0
        %1267 = vmatpush2.msra.mxu0 0.0
        %1268 = vmatprep.subr.mxu0 0.0
        %1269 = vmatpush2.msra.mxu0 0.0
        %1270 = vmatprep.subr.mxu0 0.0
        %1271 = vmatpush2.msra.mxu0 0.0
        %1272 = vmatprep.subr.mxu0 0.0
        %1273 = vmatpush2.msra.mxu0 0.0
        %1274 = vmatprep.mubr.f32.mxu0 0.0
        %1275 = vmatmul.mubr.f32.gmra.mxu0 %v1133
        %v1276 = vpop.f32.mrf.mxu0
        %v1277 = vadd.f32 0.0, %v1276
        %v1278 = vpop.f32.mrf.mxu0
        %1279 = vdwg.mxu0
        %s1280 = scalar_lea.vmem %s3, 64
        %v1281 = vld [vmem:[%s1280] sm:$0xff]
        %v1282 = vld [vmem:[%s1280 + $0x8] sm:$0xff]
        %v1283 = vld [vmem:[%s1280 + $0x10] sm:$0xff]
        %v1284 = vld [vmem:[%s1280 + $0x18] sm:$0xff]
        %1285 = vmatprep.subr.mxu0 0.0
        %1286 = vmatpush1.msra.mxu0 0.0
        %1287 = vmatprep.subr.mxu0 0.0
        %1288 = vmatpush1.msra.mxu0 0.0
        %1289 = vmatprep.subr.mxu0 0.0
        %1290 = vmatpush1.msra.mxu0 0.0
        %1291 = vmatprep.subr.mxu0 0.0
        %1292 = vmatpush1.msra.mxu0 0.0
        %1293 = vmatprep.subr.mxu0 0.0
        %1294 = vmatpush1.msra.mxu0 0.0
        %1295 = vmatprep.subr.mxu0 0.0
        %1296 = vmatpush1.msra.mxu0 0.0
        %1297 = vmatprep.subr.mxu0 0.0
        %1298 = vmatpush1.msra.mxu0 0.0
        %1299 = vmatprep.subr.mxu0 0.0
        %1300 = vmatpush1.msra.mxu0 0.0
        %1301 = vmatprep.subr.mxu0 0.0
        %1302 = vmatpush1.msra.mxu0 0.0
        %1303 = vmatprep.subr.mxu0 0.0
        %1304 = vmatpush1.msra.mxu0 0.0
        %1305 = vmatprep.subr.mxu0 0.0
        %1306 = vmatpush1.msra.mxu0 0.0
        %1307 = vmatprep.subr.mxu0 0.0
        %1308 = vmatpush1.msra.mxu0 0.0
        %1309 = vmatprep.subr.mxu0 0.0
        %1310 = vmatpush1.msra.mxu0 %v1284
        %1311 = vmatprep.subr.mxu0 0.0
        %1312 = vmatpush1.msra.mxu0 %v1283
        %1313 = vmatprep.subr.mxu0 0.0
        %1314 = vmatpush1.msra.mxu0 %v1282
        %1315 = vmatprep.subr.mxu0 0.0
        %1316 = vmatpush1.msra.mxu0 %v1281
        %1317 = vmatprep.subr.mxu0 0.0
        %1318 = vmatpush2.msra.mxu0 0.0
        %1319 = vmatprep.subr.mxu0 0.0
        %1320 = vmatpush2.msra.mxu0 0.0
        %1321 = vmatprep.subr.mxu0 0.0
        %1322 = vmatpush2.msra.mxu0 0.0
        %1323 = vmatprep.subr.mxu0 0.0
        %1324 = vmatpush2.msra.mxu0 0.0
        %1325 = vmatprep.subr.mxu0 0.0
        %1326 = vmatpush2.msra.mxu0 0.0
        %1327 = vmatprep.subr.mxu0 0.0
        %1328 = vmatpush2.msra.mxu0 0.0
        %1329 = vmatprep.subr.mxu0 0.0
        %1330 = vmatpush2.msra.mxu0 0.0
        %1331 = vmatprep.subr.mxu0 0.0
        %1332 = vmatpush2.msra.mxu0 0.0
        %1333 = vmatprep.subr.mxu0 0.0
        %1334 = vmatpush2.msra.mxu0 0.0
        %1335 = vmatprep.subr.mxu0 0.0
        %1336 = vmatpush2.msra.mxu0 0.0
        %1337 = vmatprep.subr.mxu0 0.0
        %1338 = vmatpush2.msra.mxu0 0.0
        %1339 = vmatprep.subr.mxu0 0.0
        %1340 = vmatpush2.msra.mxu0 0.0
        %1341 = vmatprep.subr.mxu0 0.0
        %1342 = vmatpush2.msra.mxu0 0.0
        %1343 = vmatprep.subr.mxu0 0.0
        %1344 = vmatpush2.msra.mxu0 0.0
        %1345 = vmatprep.subr.mxu0 0.0
        %1346 = vmatpush2.msra.mxu0 0.0
        %1347 = vmatprep.subr.mxu0 0.0
        %1348 = vmatpush2.msra.mxu0 0.0
        %1349 = vmatprep.mubr.f32.mxu0 0.0
        %1350 = vmatmul.mubr.f32.gmra.mxu0 %v1133
        %v1351 = vpop.f32.mrf.mxu0
        %v1352 = vadd.f32 0.0, %v1351
        %v1353 = vpop.f32.mrf.mxu0
        %1354 = vdwg.mxu0
        %s1355 = scalar_lea.vmem %s3, 96
        %v1356 = vld [vmem:[%s1355] sm:$0xff]
        %v1357 = vld [vmem:[%s1355 + $0x8] sm:$0xff]
        %v1358 = vld [vmem:[%s1355 + $0x10] sm:$0xff]
        %v1359 = vld [vmem:[%s1355 + $0x18] sm:$0xff]
        %1360 = vmatprep.subr.mxu0 0.0
        %1361 = vmatpush1.msra.mxu0 0.0
        %1362 = vmatprep.subr.mxu0 0.0
        %1363 = vmatpush1.msra.mxu0 0.0
        %1364 = vmatprep.subr.mxu0 0.0
        %1365 = vmatpush1.msra.mxu0 0.0
        %1366 = vmatprep.subr.mxu0 0.0
        %1367 = vmatpush1.msra.mxu0 0.0
        %1368 = vmatprep.subr.mxu0 0.0
        %1369 = vmatpush1.msra.mxu0 0.0
        %1370 = vmatprep.subr.mxu0 0.0
        %1371 = vmatpush1.msra.mxu0 0.0
        %1372 = vmatprep.subr.mxu0 0.0
        %1373 = vmatpush1.msra.mxu0 0.0
        %1374 = vmatprep.subr.mxu0 0.0
        %1375 = vmatpush1.msra.mxu0 0.0
        %1376 = vmatprep.subr.mxu0 0.0
        %1377 = vmatpush1.msra.mxu0 0.0
        %1378 = vmatprep.subr.mxu0 0.0
        %1379 = vmatpush1.msra.mxu0 0.0
        %1380 = vmatprep.subr.mxu0 0.0
        %1381 = vmatpush1.msra.mxu0 0.0
        %1382 = vmatprep.subr.mxu0 0.0
        %1383 = vmatpush1.msra.mxu0 0.0
        %1384 = vmatprep.subr.mxu0 0.0
        %1385 = vmatpush1.msra.mxu0 %v1359
        %1386 = vmatprep.subr.mxu0 0.0
        %1387 = vmatpush1.msra.mxu0 %v1358
        %1388 = vmatprep.subr.mxu0 0.0
        %1389 = vmatpush1.msra.mxu0 %v1357
        %1390 = vmatprep.subr.mxu0 0.0
        %1391 = vmatpush1.msra.mxu0 %v1356
        %1392 = vmatprep.subr.mxu0 0.0
        %1393 = vmatpush2.msra.mxu0 0.0
        %1394 = vmatprep.subr.mxu0 0.0
        %1395 = vmatpush2.msra.mxu0 0.0
        %1396 = vmatprep.subr.mxu0 0.0
        %1397 = vmatpush2.msra.mxu0 0.0
        %1398 = vmatprep.subr.mxu0 0.0
        %1399 = vmatpush2.msra.mxu0 0.0
        %1400 = vmatprep.subr.mxu0 0.0
        %1401 = vmatpush2.msra.mxu0 0.0
        %1402 = vmatprep.subr.mxu0 0.0
        %1403 = vmatpush2.msra.mxu0 0.0
        %1404 = vmatprep.subr.mxu0 0.0
        %1405 = vmatpush2.msra.mxu0 0.0
        %1406 = vmatprep.subr.mxu0 0.0
        %1407 = vmatpush2.msra.mxu0 0.0
        %1408 = vmatprep.subr.mxu0 0.0
        %1409 = vmatpush2.msra.mxu0 0.0
        %1410 = vmatprep.subr.mxu0 0.0
        %1411 = vmatpush2.msra.mxu0 0.0
        %1412 = vmatprep.subr.mxu0 0.0
        %1413 = vmatpush2.msra.mxu0 0.0
        %1414 = vmatprep.subr.mxu0 0.0
        %1415 = vmatpush2.msra.mxu0 0.0
        %1416 = vmatprep.subr.mxu0 0.0
        %1417 = vmatpush2.msra.mxu0 0.0
        %1418 = vmatprep.subr.mxu0 0.0
        %1419 = vmatpush2.msra.mxu0 0.0
        %1420 = vmatprep.subr.mxu0 0.0
        %1421 = vmatpush2.msra.mxu0 0.0
        %1422 = vmatprep.subr.mxu0 0.0
        %1423 = vmatpush2.msra.mxu0 0.0
        %1424 = vmatprep.mubr.f32.mxu0 0.0
        %1425 = vmatmul.mubr.f32.gmra.mxu0 %v1133
        %v1426 = vpop.f32.mrf.mxu0
        %v1427 = vadd.f32 0.0, %v1426
        %v1428 = vpop.f32.mrf.mxu0
        %1429 = vdwg.mxu0
        %v1430 = vld [vmem:[#allocation2] sm:$0xff]
        %v1431 = vld [vmem:[#allocation2 + $0x8] sm:$0xff]
        %v1432 = vld [vmem:[#allocation2 + $0x10] sm:$0xff]
        %v1433 = vld [vmem:[#allocation2 + $0x18] sm:$0xff]
        %v1434 = vld [vmem:[#allocation3] sm:$0xff]
        %v1435 = vld [vmem:[#allocation3 + $0x8] sm:$0xff]
        %v1436 = vld [vmem:[#allocation3 + $0x10] sm:$0xff]
        %v1437 = vld [vmem:[#allocation3 + $0x18] sm:$0xff]
        %vm1438 = vcmask 64512
        %v1440 = vsel %vm1438, %v1202, 0
        %v1443 = vsel %vm1438, %v1430, 0
        %1445 = vmatprep.subr.mxu0 0.0
        %1446 = vmatpush1.xpose.msra.mxu0 0.0
        %1447 = vmatprep.subr.mxu0 0.0
        %1448 = vmatpush1.xpose.msra.mxu0 0.0
        %1449 = vmatprep.subr.mxu0 0.0
        %1450 = vmatpush1.xpose.msra.mxu0 0.0
        %1451 = vmatprep.subr.mxu0 0.0
        %1452 = vmatpush1.xpose.msra.mxu0 0.0
        %1453 = vmatprep.subr.mxu0 0.0
        %1454 = vmatpush1.xpose.msra.mxu0 0.0
        %1455 = vmatprep.subr.mxu0 0.0
        %1456 = vmatpush1.xpose.msra.mxu0 0.0
        %1457 = vmatprep.subr.mxu0 0.0
        %1458 = vmatpush1.xpose.msra.mxu0 0.0
        %1459 = vmatprep.subr.mxu0 0.0
        %1460 = vmatpush1.xpose.msra.mxu0 0.0
        %1461 = vmatprep.subr.mxu0 0.0
        %1462 = vmatpush1.xpose.msra.mxu0 0.0
        %1463 = vmatprep.subr.mxu0 0.0
        %1464 = vmatpush1.xpose.msra.mxu0 0.0
        %1465 = vmatprep.subr.mxu0 0.0
        %1466 = vmatpush1.xpose.msra.mxu0 0.0
        %1467 = vmatprep.subr.mxu0 0.0
        %1468 = vmatpush1.xpose.msra.mxu0 0.0
        %1469 = vmatprep.subr.mxu0 0.0
        %1470 = vmatpush1.xpose.msra.mxu0 0.0
        %1471 = vmatprep.subr.mxu0 0.0
        %1472 = vmatpush1.xpose.msra.mxu0 0.0
        %1473 = vmatprep.subr.mxu0 0.0
        %1474 = vmatpush1.xpose.msra.mxu0 0.0
        %1475 = vmatprep.subr.mxu0 0.0
        %1476 = vmatpush1.xpose.msra.mxu0 %v1443
        %1477 = vmatprep.subr.mxu0 0.0
        %1478 = vmatpush2.xpose.msra.mxu0 0.0
        %1479 = vmatprep.subr.mxu0 0.0
        %1480 = vmatpush2.xpose.msra.mxu0 0.0
        %1481 = vmatprep.subr.mxu0 0.0
        %1482 = vmatpush2.xpose.msra.mxu0 0.0
        %1483 = vmatprep.subr.mxu0 0.0
        %1484 = vmatpush2.xpose.msra.mxu0 0.0
        %1485 = vmatprep.subr.mxu0 0.0
        %1486 = vmatpush2.xpose.msra.mxu0 0.0
        %1487 = vmatprep.subr.mxu0 0.0
        %1488 = vmatpush2.xpose.msra.mxu0 0.0
        %1489 = vmatprep.subr.mxu0 0.0
        %1490 = vmatpush2.xpose.msra.mxu0 0.0
        %1491 = vmatprep.subr.mxu0 0.0
        %1492 = vmatpush2.xpose.msra.mxu0 0.0
        %1493 = vmatprep.subr.mxu0 0.0
        %1494 = vmatpush2.xpose.msra.mxu0 0.0
        %1495 = vmatprep.subr.mxu0 0.0
        %1496 = vmatpush2.xpose.msra.mxu0 0.0
        %1497 = vmatprep.subr.mxu0 0.0
        %1498 = vmatpush2.xpose.msra.mxu0 0.0
        %1499 = vmatprep.subr.mxu0 0.0
        %1500 = vmatpush2.xpose.msra.mxu0 0.0
        %1501 = vmatprep.subr.mxu0 0.0
        %1502 = vmatpush2.xpose.msra.mxu0 0.0
        %1503 = vmatprep.subr.mxu0 0.0
        %1504 = vmatpush2.xpose.msra.mxu0 0.0
        %1505 = vmatprep.subr.mxu0 0.0
        %1506 = vmatpush2.xpose.msra.mxu0 0.0
        %1507 = vmatprep.subr.mxu0 0.0
        %1508 = vmatpush2.xpose.msra.mxu0 0.0
        %1509 = vmatprep.mubr.f32.mxu0 0.0
        %1510 = vmatmul.mubr.f32.gmra.mxu0 %v1440
        %v1511 = vpop.f32.mrf.mxu0
        %v1512 = vadd.f32 0.0, %v1511
        %v1513 = vpop.f32.mrf.mxu0
        %1514 = vdwg.mxu0
        %v1516 = vsel %vm1438, %v1277, 0
        %v1519 = vsel %vm1438, %v1431, 0
        %1521 = vmatprep.subr.mxu0 0.0
        %1522 = vmatpush1.xpose.msra.mxu0 0.0
        %1523 = vmatprep.subr.mxu0 0.0
        %1524 = vmatpush1.xpose.msra.mxu0 0.0
        %1525 = vmatprep.subr.mxu0 0.0
        %1526 = vmatpush1.xpose.msra.mxu0 0.0
        %1527 = vmatprep.subr.mxu0 0.0
        %1528 = vmatpush1.xpose.msra.mxu0 0.0
        %1529 = vmatprep.subr.mxu0 0.0
        %1530 = vmatpush1.xpose.msra.mxu0 0.0
        %1531 = vmatprep.subr.mxu0 0.0
        %1532 = vmatpush1.xpose.msra.mxu0 0.0
        %1533 = vmatprep.subr.mxu0 0.0
        %1534 = vmatpush1.xpose.msra.mxu0 0.0
        %1535 = vmatprep.subr.mxu0 0.0
        %1536 = vmatpush1.xpose.msra.mxu0 0.0
        %1537 = vmatprep.subr.mxu0 0.0
        %1538 = vmatpush1.xpose.msra.mxu0 0.0
        %1539 = vmatprep.subr.mxu0 0.0
        %1540 = vmatpush1.xpose.msra.mxu0 0.0
        %1541 = vmatprep.subr.mxu0 0.0
        %1542 = vmatpush1.xpose.msra.mxu0 0.0
        %1543 = vmatprep.subr.mxu0 0.0
        %1544 = vmatpush1.xpose.msra.mxu0 0.0
        %1545 = vmatprep.subr.mxu0 0.0
        %1546 = vmatpush1.xpose.msra.mxu0 0.0
        %1547 = vmatprep.subr.mxu0 0.0
        %1548 = vmatpush1.xpose.msra.mxu0 0.0
        %1549 = vmatprep.subr.mxu0 0.0
        %1550 = vmatpush1.xpose.msra.mxu0 0.0
        %1551 = vmatprep.subr.mxu0 0.0
        %1552 = vmatpush1.xpose.msra.mxu0 %v1519
        %1553 = vmatprep.subr.mxu0 0.0
        %1554 = vmatpush2.xpose.msra.mxu0 0.0
        %1555 = vmatprep.subr.mxu0 0.0
        %1556 = vmatpush2.xpose.msra.mxu0 0.0
        %1557 = vmatprep.subr.mxu0 0.0
        %1558 = vmatpush2.xpose.msra.mxu0 0.0
        %1559 = vmatprep.subr.mxu0 0.0
        %1560 = vmatpush2.xpose.msra.mxu0 0.0
        %1561 = vmatprep.subr.mxu0 0.0
        %1562 = vmatpush2.xpose.msra.mxu0 0.0
        %1563 = vmatprep.subr.mxu0 0.0
        %1564 = vmatpush2.xpose.msra.mxu0 0.0
        %1565 = vmatprep.subr.mxu0 0.0
        %1566 = vmatpush2.xpose.msra.mxu0 0.0
        %1567 = vmatprep.subr.mxu0 0.0
        %1568 = vmatpush2.xpose.msra.mxu0 0.0
        %1569 = vmatprep.subr.mxu0 0.0
        %1570 = vmatpush2.xpose.msra.mxu0 0.0
        %1571 = vmatprep.subr.mxu0 0.0
        %1572 = vmatpush2.xpose.msra.mxu0 0.0
        %1573 = vmatprep.subr.mxu0 0.0
        %1574 = vmatpush2.xpose.msra.mxu0 0.0
        %1575 = vmatprep.subr.mxu0 0.0
        %1576 = vmatpush2.xpose.msra.mxu0 0.0
        %1577 = vmatprep.subr.mxu0 0.0
        %1578 = vmatpush2.xpose.msra.mxu0 0.0
        %1579 = vmatprep.subr.mxu0 0.0
        %1580 = vmatpush2.xpose.msra.mxu0 0.0
        %1581 = vmatprep.subr.mxu0 0.0
        %1582 = vmatpush2.xpose.msra.mxu0 0.0
        %1583 = vmatprep.subr.mxu0 0.0
        %1584 = vmatpush2.xpose.msra.mxu0 0.0
        %1585 = vmatprep.mubr.f32.mxu0 0.0
        %1586 = vmatmul.mubr.f32.gmra.mxu0 %v1516
        %v1587 = vpop.f32.mrf.mxu0
        %v1588 = vadd.f32 0.0, %v1587
        %v1589 = vpop.f32.mrf.mxu0
        %1590 = vdwg.mxu0
        %v1592 = vsel %vm1438, %v1352, 0
        %v1595 = vsel %vm1438, %v1432, 0
        %1597 = vmatprep.subr.mxu0 0.0
        %1598 = vmatpush1.xpose.msra.mxu0 0.0
        %1599 = vmatprep.subr.mxu0 0.0
        %1600 = vmatpush1.xpose.msra.mxu0 0.0
        %1601 = vmatprep.subr.mxu0 0.0
        %1602 = vmatpush1.xpose.msra.mxu0 0.0
        %1603 = vmatprep.subr.mxu0 0.0
        %1604 = vmatpush1.xpose.msra.mxu0 0.0
        %1605 = vmatprep.subr.mxu0 0.0
        %1606 = vmatpush1.xpose.msra.mxu0 0.0
        %1607 = vmatprep.subr.mxu0 0.0
        %1608 = vmatpush1.xpose.msra.mxu0 0.0
        %1609 = vmatprep.subr.mxu0 0.0
        %1610 = vmatpush1.xpose.msra.mxu0 0.0
        %1611 = vmatprep.subr.mxu0 0.0
        %1612 = vmatpush1.xpose.msra.mxu0 0.0
        %1613 = vmatprep.subr.mxu0 0.0
        %1614 = vmatpush1.xpose.msra.mxu0 0.0
        %1615 = vmatprep.subr.mxu0 0.0
        %1616 = vmatpush1.xpose.msra.mxu0 0.0
        %1617 = vmatprep.subr.mxu0 0.0
        %1618 = vmatpush1.xpose.msra.mxu0 0.0
        %1619 = vmatprep.subr.mxu0 0.0
        %1620 = vmatpush1.xpose.msra.mxu0 0.0
        %1621 = vmatprep.subr.mxu0 0.0
        %1622 = vmatpush1.xpose.msra.mxu0 0.0
        %1623 = vmatprep.subr.mxu0 0.0
        %1624 = vmatpush1.xpose.msra.mxu0 0.0
        %1625 = vmatprep.subr.mxu0 0.0
        %1626 = vmatpush1.xpose.msra.mxu0 0.0
        %1627 = vmatprep.subr.mxu0 0.0
        %1628 = vmatpush1.xpose.msra.mxu0 %v1595
        %1629 = vmatprep.subr.mxu0 0.0
        %1630 = vmatpush2.xpose.msra.mxu0 0.0
        %1631 = vmatprep.subr.mxu0 0.0
        %1632 = vmatpush2.xpose.msra.mxu0 0.0
        %1633 = vmatprep.subr.mxu0 0.0
        %1634 = vmatpush2.xpose.msra.mxu0 0.0
        %1635 = vmatprep.subr.mxu0 0.0
        %1636 = vmatpush2.xpose.msra.mxu0 0.0
        %1637 = vmatprep.subr.mxu0 0.0
        %1638 = vmatpush2.xpose.msra.mxu0 0.0
        %1639 = vmatprep.subr.mxu0 0.0
        %1640 = vmatpush2.xpose.msra.mxu0 0.0
        %1641 = vmatprep.subr.mxu0 0.0
        %1642 = vmatpush2.xpose.msra.mxu0 0.0
        %1643 = vmatprep.subr.mxu0 0.0
        %1644 = vmatpush2.xpose.msra.mxu0 0.0
        %1645 = vmatprep.subr.mxu0 0.0
        %1646 = vmatpush2.xpose.msra.mxu0 0.0
        %1647 = vmatprep.subr.mxu0 0.0
        %1648 = vmatpush2.xpose.msra.mxu0 0.0
        %1649 = vmatprep.subr.mxu0 0.0
        %1650 = vmatpush2.xpose.msra.mxu0 0.0
        %1651 = vmatprep.subr.mxu0 0.0
        %1652 = vmatpush2.xpose.msra.mxu0 0.0
        %1653 = vmatprep.subr.mxu0 0.0
        %1654 = vmatpush2.xpose.msra.mxu0 0.0
        %1655 = vmatprep.subr.mxu0 0.0
        %1656 = vmatpush2.xpose.msra.mxu0 0.0
        %1657 = vmatprep.subr.mxu0 0.0
        %1658 = vmatpush2.xpose.msra.mxu0 0.0
        %1659 = vmatprep.subr.mxu0 0.0
        %1660 = vmatpush2.xpose.msra.mxu0 0.0
        %1661 = vmatprep.mubr.f32.mxu0 0.0
        %1662 = vmatmul.mubr.f32.gmra.mxu0 %v1592
        %v1663 = vpop.f32.mrf.mxu0
        %v1664 = vadd.f32 0.0, %v1663
        %v1665 = vpop.f32.mrf.mxu0
        %1666 = vdwg.mxu0
        %v1668 = vsel %vm1438, %v1427, 0
        %v1671 = vsel %vm1438, %v1433, 0
        %1673 = vmatprep.subr.mxu0 0.0
        %1674 = vmatpush1.xpose.msra.mxu0 0.0
        %1675 = vmatprep.subr.mxu0 0.0
        %1676 = vmatpush1.xpose.msra.mxu0 0.0
        %1677 = vmatprep.subr.mxu0 0.0
        %1678 = vmatpush1.xpose.msra.mxu0 0.0
        %1679 = vmatprep.subr.mxu0 0.0
        %1680 = vmatpush1.xpose.msra.mxu0 0.0
        %1681 = vmatprep.subr.mxu0 0.0
        %1682 = vmatpush1.xpose.msra.mxu0 0.0
        %1683 = vmatprep.subr.mxu0 0.0
        %1684 = vmatpush1.xpose.msra.mxu0 0.0
        %1685 = vmatprep.subr.mxu0 0.0
        %1686 = vmatpush1.xpose.msra.mxu0 0.0
        %1687 = vmatprep.subr.mxu0 0.0
        %1688 = vmatpush1.xpose.msra.mxu0 0.0
        %1689 = vmatprep.subr.mxu0 0.0
        %1690 = vmatpush1.xpose.msra.mxu0 0.0
        %1691 = vmatprep.subr.mxu0 0.0
        %1692 = vmatpush1.xpose.msra.mxu0 0.0
        %1693 = vmatprep.subr.mxu0 0.0
        %1694 = vmatpush1.xpose.msra.mxu0 0.0
        %1695 = vmatprep.subr.mxu0 0.0
        %1696 = vmatpush1.xpose.msra.mxu0 0.0
        %1697 = vmatprep.subr.mxu0 0.0
        %1698 = vmatpush1.xpose.msra.mxu0 0.0
        %1699 = vmatprep.subr.mxu0 0.0
        %1700 = vmatpush1.xpose.msra.mxu0 0.0
        %1701 = vmatprep.subr.mxu0 0.0
        %1702 = vmatpush1.xpose.msra.mxu0 0.0
        %1703 = vmatprep.subr.mxu0 0.0
        %1704 = vmatpush1.xpose.msra.mxu0 %v1671
        %1705 = vmatprep.subr.mxu0 0.0
        %1706 = vmatpush2.xpose.msra.mxu0 0.0
        %1707 = vmatprep.subr.mxu0 0.0
        %1708 = vmatpush2.xpose.msra.mxu0 0.0
        %1709 = vmatprep.subr.mxu0 0.0
        %1710 = vmatpush2.xpose.msra.mxu0 0.0
        %1711 = vmatprep.subr.mxu0 0.0
        %1712 = vmatpush2.xpose.msra.mxu0 0.0
        %1713 = vmatprep.subr.mxu0 0.0
        %1714 = vmatpush2.xpose.msra.mxu0 0.0
        %1715 = vmatprep.subr.mxu0 0.0
        %1716 = vmatpush2.xpose.msra.mxu0 0.0
        %1717 = vmatprep.subr.mxu0 0.0
        %1718 = vmatpush2.xpose.msra.mxu0 0.0
        %1719 = vmatprep.subr.mxu0 0.0
        %1720 = vmatpush2.xpose.msra.mxu0 0.0
        %1721 = vmatprep.subr.mxu0 0.0
        %1722 = vmatpush2.xpose.msra.mxu0 0.0
        %1723 = vmatprep.subr.mxu0 0.0
        %1724 = vmatpush2.xpose.msra.mxu0 0.0
        %1725 = vmatprep.subr.mxu0 0.0
        %1726 = vmatpush2.xpose.msra.mxu0 0.0
        %1727 = vmatprep.subr.mxu0 0.0
        %1728 = vmatpush2.xpose.msra.mxu0 0.0
        %1729 = vmatprep.subr.mxu0 0.0
        %1730 = vmatpush2.xpose.msra.mxu0 0.0
        %1731 = vmatprep.subr.mxu0 0.0
        %1732 = vmatpush2.xpose.msra.mxu0 0.0
        %1733 = vmatprep.subr.mxu0 0.0
        %1734 = vmatpush2.xpose.msra.mxu0 0.0
        %1735 = vmatprep.subr.mxu0 0.0
        %1736 = vmatpush2.xpose.msra.mxu0 0.0
        %1737 = vmatprep.mubr.f32.mxu0 0.0
        %1738 = vmatmul.mubr.f32.gmra.mxu0 %v1668
        %v1739 = vpop.f32.mrf.mxu0
        %v1740 = vadd.f32 0.0, %v1739
        %v1741 = vpop.f32.mrf.mxu0
        %1742 = vdwg.mxu0
        %v1743 = vsel %vm1438, %v1512, -inf
        %1744 = vmax.xlane.f32.xlu0 %v1743
        %v1745 = vpop.xlane.xlu0 %1744
        %v1746 = vsel %vm1438, %v1588, -inf
        %1747 = vmax.xlane.f32.xlu0 %v1746
        %v1748 = vpop.xlane.xlu0 %1747
        %v1749 = vsel %vm1438, %v1664, -inf
        %1750 = vmax.xlane.f32.xlu0 %v1749
        %v1751 = vpop.xlane.xlu0 %1750
        %v1752 = vsel %vm1438, %v1740, -inf
        %1753 = vmax.xlane.f32.xlu0 %v1752
        %v1754 = vpop.xlane.xlu0 %1753
        %v1755 = vsub.f32 %v1512, %v1745
        %v1756 = vsub.f32 %v1588, %v1748
        %v1757 = vsub.f32 %v1664, %v1751
        %v1758 = vsub.f32 %v1740, %v1754
        %v1759 = vmul.f32 %v1755, 1.442695
        %v1760 = vpow.pop %v1759
        %v1761 = vmul.f32 %v1756, 1.442695
        %v1762 = vpow.pop %v1761
        %v1763 = vmul.f32 %v1757, 1.442695
        %v1764 = vpow.pop %v1763
        %v1765 = vmul.f32 %v1758, 1.442695
        %v1766 = vpow.pop %v1765
        %v1767 = vsel %vm1438, %v1760, 0.0
        %1768 = vadd.xlane.f32.xlu0 %v1767
        %v1769 = vpop.xlane.xlu0 %1768
        %v1770 = vsel %vm1438, %v1762, 0.0
        %1771 = vadd.xlane.f32.xlu0 %v1770
        %v1772 = vpop.xlane.xlu0 %1771
        %v1773 = vsel %vm1438, %v1764, 0.0
        %1774 = vadd.xlane.f32.xlu0 %v1773
        %v1775 = vpop.xlane.xlu0 %1774
        %v1776 = vsel %vm1438, %v1766, 0.0
        %1777 = vadd.xlane.f32.xlu0 %v1776
        %v1778 = vpop.xlane.xlu0 %1777
        %v1779 = vrcp.pop %v1769
        %v1780 = vrcp.pop %v1772
        %v1781 = vrcp.pop %v1775
        %v1782 = vrcp.pop %v1778
        %v1783 = vmul.f32 %v1760, %v1779
        %v1784 = vmul.f32 %v1762, %v1780
        %v1785 = vmul.f32 %v1764, %v1781
        %v1786 = vmul.f32 %v1766, %v1782
        %1787 = vst.msk [vmem:[%s411] sm:$0xff] %vm1438, %v1783
        %1788 = vst.msk [vmem:[%s411 + $0x8] sm:$0xff] %vm1438, %v1784
        %1789 = vst.msk [vmem:[%s411 + $0x10] sm:$0xff] %vm1438, %v1785
        %1790 = vst.msk [vmem:[%s411 + $0x18] sm:$0xff] %vm1438, %v1786
        %v1792 = vsel %vm1438, %v1783, 0
        %1794 = vmatprep.subr.mxu0 0.0
        %1795 = vmatpush1.msra.mxu0 0.0
        %1796 = vmatprep.subr.mxu0 0.0
        %1797 = vmatpush1.msra.mxu0 0.0
        %1798 = vmatprep.subr.mxu0 0.0
        %1799 = vmatpush1.msra.mxu0 0.0
        %1800 = vmatprep.subr.mxu0 0.0
        %1801 = vmatpush1.msra.mxu0 0.0
        %1802 = vmatprep.subr.mxu0 0.0
        %1803 = vmatpush1.msra.mxu0 0.0
        %1804 = vmatprep.subr.mxu0 0.0
        %1805 = vmatpush1.msra.mxu0 0.0
        %1806 = vmatprep.subr.mxu0 0.0
        %1807 = vmatpush1.msra.mxu0 0.0
        %1808 = vmatprep.subr.mxu0 0.0
        %1809 = vmatpush1.msra.mxu0 0.0
        %1810 = vmatprep.subr.mxu0 0.0
        %1811 = vmatpush1.msra.mxu0 0.0
        %1812 = vmatprep.subr.mxu0 0.0
        %1813 = vmatpush1.msra.mxu0 0.0
        %1814 = vmatprep.subr.mxu0 0.0
        %1815 = vmatpush1.msra.mxu0 0.0
        %1816 = vmatprep.subr.mxu0 0.0
        %1817 = vmatpush1.msra.mxu0 0.0
        %1818 = vmatprep.subr.mxu0 0.0
        %1819 = vmatpush1.msra.mxu0 0.0
        %1820 = vmatprep.subr.mxu0 0.0
        %1821 = vmatpush1.msra.mxu0 0.0
        %1822 = vmatprep.subr.mxu0 0.0
        %1823 = vmatpush1.msra.mxu0 0.0
        %1824 = vmatprep.subr.mxu0 0.0
        %1825 = vmatpush1.msra.mxu0 %v1434
        %1826 = vmatprep.subr.mxu0 0.0
        %1827 = vmatpush2.msra.mxu0 0.0
        %1828 = vmatprep.subr.mxu0 0.0
        %1829 = vmatpush2.msra.mxu0 0.0
        %1830 = vmatprep.subr.mxu0 0.0
        %1831 = vmatpush2.msra.mxu0 0.0
        %1832 = vmatprep.subr.mxu0 0.0
        %1833 = vmatpush2.msra.mxu0 0.0
        %1834 = vmatprep.subr.mxu0 0.0
        %1835 = vmatpush2.msra.mxu0 0.0
        %1836 = vmatprep.subr.mxu0 0.0
        %1837 = vmatpush2.msra.mxu0 0.0
        %1838 = vmatprep.subr.mxu0 0.0
        %1839 = vmatpush2.msra.mxu0 0.0
        %1840 = vmatprep.subr.mxu0 0.0
        %1841 = vmatpush2.msra.mxu0 0.0
        %1842 = vmatprep.subr.mxu0 0.0
        %1843 = vmatpush2.msra.mxu0 0.0
        %1844 = vmatprep.subr.mxu0 0.0
        %1845 = vmatpush2.msra.mxu0 0.0
        %1846 = vmatprep.subr.mxu0 0.0
        %1847 = vmatpush2.msra.mxu0 0.0
        %1848 = vmatprep.subr.mxu0 0.0
        %1849 = vmatpush2.msra.mxu0 0.0
        %1850 = vmatprep.subr.mxu0 0.0
        %1851 = vmatpush2.msra.mxu0 0.0
        %1852 = vmatprep.subr.mxu0 0.0
        %1853 = vmatpush2.msra.mxu0 0.0
        %1854 = vmatprep.subr.mxu0 0.0
        %1855 = vmatpush2.msra.mxu0 0.0
        %1856 = vmatprep.subr.mxu0 0.0
        %1857 = vmatpush2.msra.mxu0 0.0
        %1858 = vmatprep.mubr.f32.mxu0 0.0
        %1859 = vmatmul.mubr.f32.gmra.mxu0 %v1792
        %v1860 = vpop.f32.mrf.mxu0
        %v1861 = vadd.f32 0.0, %v1860
        %v1862 = vpop.f32.mrf.mxu0
        %1863 = vdwg.mxu0
        %v1865 = vsel %vm1438, %v1784, 0
        %1867 = vmatprep.subr.mxu0 0.0
        %1868 = vmatpush1.msra.mxu0 0.0
        %1869 = vmatprep.subr.mxu0 0.0
        %1870 = vmatpush1.msra.mxu0 0.0
        %1871 = vmatprep.subr.mxu0 0.0
        %1872 = vmatpush1.msra.mxu0 0.0
        %1873 = vmatprep.subr.mxu0 0.0
        %1874 = vmatpush1.msra.mxu0 0.0
        %1875 = vmatprep.subr.mxu0 0.0
        %1876 = vmatpush1.msra.mxu0 0.0
        %1877 = vmatprep.subr.mxu0 0.0
        %1878 = vmatpush1.msra.mxu0 0.0
        %1879 = vmatprep.subr.mxu0 0.0
        %1880 = vmatpush1.msra.mxu0 0.0
        %1881 = vmatprep.subr.mxu0 0.0
        %1882 = vmatpush1.msra.mxu0 0.0
        %1883 = vmatprep.subr.mxu0 0.0
        %1884 = vmatpush1.msra.mxu0 0.0
        %1885 = vmatprep.subr.mxu0 0.0
        %1886 = vmatpush1.msra.mxu0 0.0
        %1887 = vmatprep.subr.mxu0 0.0
        %1888 = vmatpush1.msra.mxu0 0.0
        %1889 = vmatprep.subr.mxu0 0.0
        %1890 = vmatpush1.msra.mxu0 0.0
        %1891 = vmatprep.subr.mxu0 0.0
        %1892 = vmatpush1.msra.mxu0 0.0
        %1893 = vmatprep.subr.mxu0 0.0
        %1894 = vmatpush1.msra.mxu0 0.0
        %1895 = vmatprep.subr.mxu0 0.0
        %1896 = vmatpush1.msra.mxu0 0.0
        %1897 = vmatprep.subr.mxu0 0.0
        %1898 = vmatpush1.msra.mxu0 %v1435
        %1899 = vmatprep.subr.mxu0 0.0
        %1900 = vmatpush2.msra.mxu0 0.0
        %1901 = vmatprep.subr.mxu0 0.0
        %1902 = vmatpush2.msra.mxu0 0.0
        %1903 = vmatprep.subr.mxu0 0.0
        %1904 = vmatpush2.msra.mxu0 0.0
        %1905 = vmatprep.subr.mxu0 0.0
        %1906 = vmatpush2.msra.mxu0 0.0
        %1907 = vmatprep.subr.mxu0 0.0
        %1908 = vmatpush2.msra.mxu0 0.0
        %1909 = vmatprep.subr.mxu0 0.0
        %1910 = vmatpush2.msra.mxu0 0.0
        %1911 = vmatprep.subr.mxu0 0.0
        %1912 = vmatpush2.msra.mxu0 0.0
        %1913 = vmatprep.subr.mxu0 0.0
        %1914 = vmatpush2.msra.mxu0 0.0
        %1915 = vmatprep.subr.mxu0 0.0
        %1916 = vmatpush2.msra.mxu0 0.0
        %1917 = vmatprep.subr.mxu0 0.0
        %1918 = vmatpush2.msra.mxu0 0.0
        %1919 = vmatprep.subr.mxu0 0.0
        %1920 = vmatpush2.msra.mxu0 0.0
        %1921 = vmatprep.subr.mxu0 0.0
        %1922 = vmatpush2.msra.mxu0 0.0
        %1923 = vmatprep.subr.mxu0 0.0
        %1924 = vmatpush2.msra.mxu0 0.0
        %1925 = vmatprep.subr.mxu0 0.0
        %1926 = vmatpush2.msra.mxu0 0.0
        %1927 = vmatprep.subr.mxu0 0.0
        %1928 = vmatpush2.msra.mxu0 0.0
        %1929 = vmatprep.subr.mxu0 0.0
        %1930 = vmatpush2.msra.mxu0 0.0
        %1931 = vmatprep.mubr.f32.mxu0 0.0
        %1932 = vmatmul.mubr.f32.gmra.mxu0 %v1865
        %v1933 = vpop.f32.mrf.mxu0
        %v1934 = vadd.f32 0.0, %v1933
        %v1935 = vpop.f32.mrf.mxu0
        %1936 = vdwg.mxu0
        %v1938 = vsel %vm1438, %v1785, 0
        %1940 = vmatprep.subr.mxu0 0.0
        %1941 = vmatpush1.msra.mxu0 0.0
        %1942 = vmatprep.subr.mxu0 0.0
        %1943 = vmatpush1.msra.mxu0 0.0
        %1944 = vmatprep.subr.mxu0 0.0
        %1945 = vmatpush1.msra.mxu0 0.0
        %1946 = vmatprep.subr.mxu0 0.0
        %1947 = vmatpush1.msra.mxu0 0.0
        %1948 = vmatprep.subr.mxu0 0.0
        %1949 = vmatpush1.msra.mxu0 0.0
        %1950 = vmatprep.subr.mxu0 0.0
        %1951 = vmatpush1.msra.mxu0 0.0
        %1952 = vmatprep.subr.mxu0 0.0
        %1953 = vmatpush1.msra.mxu0 0.0
        %1954 = vmatprep.subr.mxu0 0.0
        %1955 = vmatpush1.msra.mxu0 0.0
        %1956 = vmatprep.subr.mxu0 0.0
        %1957 = vmatpush1.msra.mxu0 0.0
        %1958 = vmatprep.subr.mxu0 0.0
        %1959 = vmatpush1.msra.mxu0 0.0
        %1960 = vmatprep.subr.mxu0 0.0
        %1961 = vmatpush1.msra.mxu0 0.0
        %1962 = vmatprep.subr.mxu0 0.0
        %1963 = vmatpush1.msra.mxu0 0.0
        %1964 = vmatprep.subr.mxu0 0.0
        %1965 = vmatpush1.msra.mxu0 0.0
        %1966 = vmatprep.subr.mxu0 0.0
        %1967 = vmatpush1.msra.mxu0 0.0
        %1968 = vmatprep.subr.mxu0 0.0
        %1969 = vmatpush1.msra.mxu0 0.0
        %1970 = vmatprep.subr.mxu0 0.0
        %1971 = vmatpush1.msra.mxu0 %v1436
        %1972 = vmatprep.subr.mxu0 0.0
        %1973 = vmatpush2.msra.mxu0 0.0
        %1974 = vmatprep.subr.mxu0 0.0
        %1975 = vmatpush2.msra.mxu0 0.0
        %1976 = vmatprep.subr.mxu0 0.0
        %1977 = vmatpush2.msra.mxu0 0.0
        %1978 = vmatprep.subr.mxu0 0.0
        %1979 = vmatpush2.msra.mxu0 0.0
        %1980 = vmatprep.subr.mxu0 0.0
        %1981 = vmatpush2.msra.mxu0 0.0
        %1982 = vmatprep.subr.mxu0 0.0
        %1983 = vmatpush2.msra.mxu0 0.0
        %1984 = vmatprep.subr.mxu0 0.0
        %1985 = vmatpush2.msra.mxu0 0.0
        %1986 = vmatprep.subr.mxu0 0.0
        %1987 = vmatpush2.msra.mxu0 0.0
        %1988 = vmatprep.subr.mxu0 0.0
        %1989 = vmatpush2.msra.mxu0 0.0
        %1990 = vmatprep.subr.mxu0 0.0
        %1991 = vmatpush2.msra.mxu0 0.0
        %1992 = vmatprep.subr.mxu0 0.0
        %1993 = vmatpush2.msra.mxu0 0.0
        %1994 = vmatprep.subr.mxu0 0.0
        %1995 = vmatpush2.msra.mxu0 0.0
        %1996 = vmatprep.subr.mxu0 0.0
        %1997 = vmatpush2.msra.mxu0 0.0
        %1998 = vmatprep.subr.mxu0 0.0
        %1999 = vmatpush2.msra.mxu0 0.0
        %2000 = vmatprep.subr.mxu0 0.0
        %2001 = vmatpush2.msra.mxu0 0.0
        %2002 = vmatprep.subr.mxu0 0.0
        %2003 = vmatpush2.msra.mxu0 0.0
        %2004 = vmatprep.mubr.f32.mxu0 0.0
        %2005 = vmatmul.mubr.f32.gmra.mxu0 %v1938
        %v2006 = vpop.f32.mrf.mxu0
        %v2007 = vadd.f32 0.0, %v2006
        %v2008 = vpop.f32.mrf.mxu0
        %2009 = vdwg.mxu0
        %v2011 = vsel %vm1438, %v1786, 0
        %2013 = vmatprep.subr.mxu0 0.0
        %2014 = vmatpush1.msra.mxu0 0.0
        %2015 = vmatprep.subr.mxu0 0.0
        %2016 = vmatpush1.msra.mxu0 0.0
        %2017 = vmatprep.subr.mxu0 0.0
        %2018 = vmatpush1.msra.mxu0 0.0
        %2019 = vmatprep.subr.mxu0 0.0
        %2020 = vmatpush1.msra.mxu0 0.0
        %2021 = vmatprep.subr.mxu0 0.0
        %2022 = vmatpush1.msra.mxu0 0.0
        %2023 = vmatprep.subr.mxu0 0.0
        %2024 = vmatpush1.msra.mxu0 0.0
        %2025 = vmatprep.subr.mxu0 0.0
        %2026 = vmatpush1.msra.mxu0 0.0
        %2027 = vmatprep.subr.mxu0 0.0
        %2028 = vmatpush1.msra.mxu0 0.0
        %2029 = vmatprep.subr.mxu0 0.0
        %2030 = vmatpush1.msra.mxu0 0.0
        %2031 = vmatprep.subr.mxu0 0.0
        %2032 = vmatpush1.msra.mxu0 0.0
        %2033 = vmatprep.subr.mxu0 0.0
        %2034 = vmatpush1.msra.mxu0 0.0
        %2035 = vmatprep.subr.mxu0 0.0
        %2036 = vmatpush1.msra.mxu0 0.0
        %2037 = vmatprep.subr.mxu0 0.0
        %2038 = vmatpush1.msra.mxu0 0.0
        %2039 = vmatprep.subr.mxu0 0.0
        %2040 = vmatpush1.msra.mxu0 0.0
        %2041 = vmatprep.subr.mxu0 0.0
        %2042 = vmatpush1.msra.mxu0 0.0
        %2043 = vmatprep.subr.mxu0 0.0
        %2044 = vmatpush1.msra.mxu0 %v1437
        %2045 = vmatprep.subr.mxu0 0.0
        %2046 = vmatpush2.msra.mxu0 0.0
        %2047 = vmatprep.subr.mxu0 0.0
        %2048 = vmatpush2.msra.mxu0 0.0
        %2049 = vmatprep.subr.mxu0 0.0
        %2050 = vmatpush2.msra.mxu0 0.0
        %2051 = vmatprep.subr.mxu0 0.0
        %2052 = vmatpush2.msra.mxu0 0.0
        %2053 = vmatprep.subr.mxu0 0.0
        %2054 = vmatpush2.msra.mxu0 0.0
        %2055 = vmatprep.subr.mxu0 0.0
        %2056 = vmatpush2.msra.mxu0 0.0
        %2057 = vmatprep.subr.mxu0 0.0
        %2058 = vmatpush2.msra.mxu0 0.0
        %2059 = vmatprep.subr.mxu0 0.0
        %2060 = vmatpush2.msra.mxu0 0.0
        %2061 = vmatprep.subr.mxu0 0.0
        %2062 = vmatpush2.msra.mxu0 0.0
        %2063 = vmatprep.subr.mxu0 0.0
        %2064 = vmatpush2.msra.mxu0 0.0
        %2065 = vmatprep.subr.mxu0 0.0
        %2066 = vmatpush2.msra.mxu0 0.0
        %2067 = vmatprep.subr.mxu0 0.0
        %2068 = vmatpush2.msra.mxu0 0.0
        %2069 = vmatprep.subr.mxu0 0.0
        %2070 = vmatpush2.msra.mxu0 0.0
        %2071 = vmatprep.subr.mxu0 0.0
        %2072 = vmatpush2.msra.mxu0 0.0
        %2073 = vmatprep.subr.mxu0 0.0
        %2074 = vmatpush2.msra.mxu0 0.0
        %2075 = vmatprep.subr.mxu0 0.0
        %2076 = vmatpush2.msra.mxu0 0.0
        %2077 = vmatprep.mubr.f32.mxu0 0.0
        %2078 = vmatmul.mubr.f32.gmra.mxu0 %v2011
        %v2079 = vpop.f32.mrf.mxu0
        %v2080 = vadd.f32 0.0, %v2079
        %v2081 = vpop.f32.mrf.mxu0
        %2082 = vdwg.mxu0
        %v2083 = vld [vmem:[%s6] sm:$0xff]
        %v2084 = vld [vmem:[%s6 + $0x8] sm:$0xff]
        %v2085 = vld [vmem:[%s6 + $0x10] sm:$0xff]
        %v2086 = vld [vmem:[%s6 + $0x18] sm:$0xff]
        %v2088 = vsel %vm1438, %v1861, 0
        %2090 = vmatprep.subr.mxu0 0.0
        %2091 = vmatpush1.msra.mxu0 0.0
        %2092 = vmatprep.subr.mxu0 0.0
        %2093 = vmatpush1.msra.mxu0 0.0
        %2094 = vmatprep.subr.mxu0 0.0
        %2095 = vmatpush1.msra.mxu0 0.0
        %2096 = vmatprep.subr.mxu0 0.0
        %2097 = vmatpush1.msra.mxu0 0.0
        %2098 = vmatprep.subr.mxu0 0.0
        %2099 = vmatpush1.msra.mxu0 0.0
        %2100 = vmatprep.subr.mxu0 0.0
        %2101 = vmatpush1.msra.mxu0 0.0
        %2102 = vmatprep.subr.mxu0 0.0
        %2103 = vmatpush1.msra.mxu0 0.0
        %2104 = vmatprep.subr.mxu0 0.0
        %2105 = vmatpush1.msra.mxu0 0.0
        %2106 = vmatprep.subr.mxu0 0.0
        %2107 = vmatpush1.msra.mxu0 0.0
        %2108 = vmatprep.subr.mxu0 0.0
        %2109 = vmatpush1.msra.mxu0 0.0
        %2110 = vmatprep.subr.mxu0 0.0
        %2111 = vmatpush1.msra.mxu0 0.0
        %2112 = vmatprep.subr.mxu0 0.0
        %2113 = vmatpush1.msra.mxu0 0.0
        %2114 = vmatprep.subr.mxu0 0.0
        %2115 = vmatpush1.msra.mxu0 0.0
        %2116 = vmatprep.subr.mxu0 0.0
        %2117 = vmatpush1.msra.mxu0 0.0
        %2118 = vmatprep.subr.mxu0 0.0
        %2119 = vmatpush1.msra.mxu0 0.0
        %2120 = vmatprep.subr.mxu0 0.0
        %2121 = vmatpush1.msra.mxu0 %v2083
        %2122 = vmatprep.subr.mxu0 0.0
        %2123 = vmatpush2.msra.mxu0 0.0
        %2124 = vmatprep.subr.mxu0 0.0
        %2125 = vmatpush2.msra.mxu0 0.0
        %2126 = vmatprep.subr.mxu0 0.0
        %2127 = vmatpush2.msra.mxu0 0.0
        %2128 = vmatprep.subr.mxu0 0.0
        %2129 = vmatpush2.msra.mxu0 0.0
        %2130 = vmatprep.subr.mxu0 0.0
        %2131 = vmatpush2.msra.mxu0 0.0
        %2132 = vmatprep.subr.mxu0 0.0
        %2133 = vmatpush2.msra.mxu0 0.0
        %2134 = vmatprep.subr.mxu0 0.0
        %2135 = vmatpush2.msra.mxu0 0.0
        %2136 = vmatprep.subr.mxu0 0.0
        %2137 = vmatpush2.msra.mxu0 0.0
        %2138 = vmatprep.subr.mxu0 0.0
        %2139 = vmatpush2.msra.mxu0 0.0
        %2140 = vmatprep.subr.mxu0 0.0
        %2141 = vmatpush2.msra.mxu0 0.0
        %2142 = vmatprep.subr.mxu0 0.0
        %2143 = vmatpush2.msra.mxu0 0.0
        %2144 = vmatprep.subr.mxu0 0.0
        %2145 = vmatpush2.msra.mxu0 0.0
        %2146 = vmatprep.subr.mxu0 0.0
        %2147 = vmatpush2.msra.mxu0 0.0
        %2148 = vmatprep.subr.mxu0 0.0
        %2149 = vmatpush2.msra.mxu0 0.0
        %2150 = vmatprep.subr.mxu0 0.0
        %2151 = vmatpush2.msra.mxu0 0.0
        %2152 = vmatprep.subr.mxu0 0.0
        %2153 = vmatpush2.msra.mxu0 0.0
        %2154 = vmatprep.mubr.f32.mxu0 0.0
        %2155 = vmatmul.mubr.f32.gmra.mxu0 %v2088
        %v2156 = vpop.f32.mrf.mxu0
        %v2157 = vadd.f32 0.0, %v2156
        %v2158 = vpop.f32.mrf.mxu0
        %2159 = vdwg.mxu0
        %v2161 = vsel %vm1438, %v1934, 0
        %2163 = vmatprep.subr.mxu0 0.0
        %2164 = vmatpush1.msra.mxu0 0.0
        %2165 = vmatprep.subr.mxu0 0.0
        %2166 = vmatpush1.msra.mxu0 0.0
        %2167 = vmatprep.subr.mxu0 0.0
        %2168 = vmatpush1.msra.mxu0 0.0
        %2169 = vmatprep.subr.mxu0 0.0
        %2170 = vmatpush1.msra.mxu0 0.0
        %2171 = vmatprep.subr.mxu0 0.0
        %2172 = vmatpush1.msra.mxu0 0.0
        %2173 = vmatprep.subr.mxu0 0.0
        %2174 = vmatpush1.msra.mxu0 0.0
        %2175 = vmatprep.subr.mxu0 0.0
        %2176 = vmatpush1.msra.mxu0 0.0
        %2177 = vmatprep.subr.mxu0 0.0
        %2178 = vmatpush1.msra.mxu0 0.0
        %2179 = vmatprep.subr.mxu0 0.0
        %2180 = vmatpush1.msra.mxu0 0.0
        %2181 = vmatprep.subr.mxu0 0.0
        %2182 = vmatpush1.msra.mxu0 0.0
        %2183 = vmatprep.subr.mxu0 0.0
        %2184 = vmatpush1.msra.mxu0 0.0
        %2185 = vmatprep.subr.mxu0 0.0
        %2186 = vmatpush1.msra.mxu0 0.0
        %2187 = vmatprep.subr.mxu0 0.0
        %2188 = vmatpush1.msra.mxu0 0.0
        %2189 = vmatprep.subr.mxu0 0.0
        %2190 = vmatpush1.msra.mxu0 0.0
        %2191 = vmatprep.subr.mxu0 0.0
        %2192 = vmatpush1.msra.mxu0 0.0
        %2193 = vmatprep.subr.mxu0 0.0
        %2194 = vmatpush1.msra.mxu0 %v2084
        %2195 = vmatprep.subr.mxu0 0.0
        %2196 = vmatpush2.msra.mxu0 0.0
        %2197 = vmatprep.subr.mxu0 0.0
        %2198 = vmatpush2.msra.mxu0 0.0
        %2199 = vmatprep.subr.mxu0 0.0
        %2200 = vmatpush2.msra.mxu0 0.0
        %2201 = vmatprep.subr.mxu0 0.0
        %2202 = vmatpush2.msra.mxu0 0.0
        %2203 = vmatprep.subr.mxu0 0.0
        %2204 = vmatpush2.msra.mxu0 0.0
        %2205 = vmatprep.subr.mxu0 0.0
        %2206 = vmatpush2.msra.mxu0 0.0
        %2207 = vmatprep.subr.mxu0 0.0
        %2208 = vmatpush2.msra.mxu0 0.0
        %2209 = vmatprep.subr.mxu0 0.0
        %2210 = vmatpush2.msra.mxu0 0.0
        %2211 = vmatprep.subr.mxu0 0.0
        %2212 = vmatpush2.msra.mxu0 0.0
        %2213 = vmatprep.subr.mxu0 0.0
        %2214 = vmatpush2.msra.mxu0 0.0
        %2215 = vmatprep.subr.mxu0 0.0
        %2216 = vmatpush2.msra.mxu0 0.0
        %2217 = vmatprep.subr.mxu0 0.0
        %2218 = vmatpush2.msra.mxu0 0.0
        %2219 = vmatprep.subr.mxu0 0.0
        %2220 = vmatpush2.msra.mxu0 0.0
        %2221 = vmatprep.subr.mxu0 0.0
        %2222 = vmatpush2.msra.mxu0 0.0
        %2223 = vmatprep.subr.mxu0 0.0
        %2224 = vmatpush2.msra.mxu0 0.0
        %2225 = vmatprep.subr.mxu0 0.0
        %2226 = vmatpush2.msra.mxu0 0.0
        %2227 = vmatprep.mubr.f32.mxu0 0.0
        %2228 = vmatmul.mubr.f32.gmra.mxu0 %v2161
        %v2229 = vpop.f32.mrf.mxu0
        %v2230 = vadd.f32 0.0, %v2229
        %v2231 = vpop.f32.mrf.mxu0
        %2232 = vdwg.mxu0
        %v2234 = vsel %vm1438, %v2007, 0
        %2236 = vmatprep.subr.mxu0 0.0
        %2237 = vmatpush1.msra.mxu0 0.0
        %2238 = vmatprep.subr.mxu0 0.0
        %2239 = vmatpush1.msra.mxu0 0.0
        %2240 = vmatprep.subr.mxu0 0.0
        %2241 = vmatpush1.msra.mxu0 0.0
        %2242 = vmatprep.subr.mxu0 0.0
        %2243 = vmatpush1.msra.mxu0 0.0
        %2244 = vmatprep.subr.mxu0 0.0
        %2245 = vmatpush1.msra.mxu0 0.0
        %2246 = vmatprep.subr.mxu0 0.0
        %2247 = vmatpush1.msra.mxu0 0.0
        %2248 = vmatprep.subr.mxu0 0.0
        %2249 = vmatpush1.msra.mxu0 0.0
        %2250 = vmatprep.subr.mxu0 0.0
        %2251 = vmatpush1.msra.mxu0 0.0
        %2252 = vmatprep.subr.mxu0 0.0
        %2253 = vmatpush1.msra.mxu0 0.0
        %2254 = vmatprep.subr.mxu0 0.0
        %2255 = vmatpush1.msra.mxu0 0.0
        %2256 = vmatprep.subr.mxu0 0.0
        %2257 = vmatpush1.msra.mxu0 0.0
        %2258 = vmatprep.subr.mxu0 0.0
        %2259 = vmatpush1.msra.mxu0 0.0
        %2260 = vmatprep.subr.mxu0 0.0
        %2261 = vmatpush1.msra.mxu0 0.0
        %2262 = vmatprep.subr.mxu0 0.0
        %2263 = vmatpush1.msra.mxu0 0.0
        %2264 = vmatprep.subr.mxu0 0.0
        %2265 = vmatpush1.msra.mxu0 0.0
        %2266 = vmatprep.subr.mxu0 0.0
        %2267 = vmatpush1.msra.mxu0 %v2085
        %2268 = vmatprep.subr.mxu0 0.0
        %2269 = vmatpush2.msra.mxu0 0.0
        %2270 = vmatprep.subr.mxu0 0.0
        %2271 = vmatpush2.msra.mxu0 0.0
        %2272 = vmatprep.subr.mxu0 0.0
        %2273 = vmatpush2.msra.mxu0 0.0
        %2274 = vmatprep.subr.mxu0 0.0
        %2275 = vmatpush2.msra.mxu0 0.0
        %2276 = vmatprep.subr.mxu0 0.0
        %2277 = vmatpush2.msra.mxu0 0.0
        %2278 = vmatprep.subr.mxu0 0.0
        %2279 = vmatpush2.msra.mxu0 0.0
        %2280 = vmatprep.subr.mxu0 0.0
        %2281 = vmatpush2.msra.mxu0 0.0
        %2282 = vmatprep.subr.mxu0 0.0
        %2283 = vmatpush2.msra.mxu0 0.0
        %2284 = vmatprep.subr.mxu0 0.0
        %2285 = vmatpush2.msra.mxu0 0.0
        %2286 = vmatprep.subr.mxu0 0.0
        %2287 = vmatpush2.msra.mxu0 0.0
        %2288 = vmatprep.subr.mxu0 0.0
        %2289 = vmatpush2.msra.mxu0 0.0
        %2290 = vmatprep.subr.mxu0 0.0
        %2291 = vmatpush2.msra.mxu0 0.0
        %2292 = vmatprep.subr.mxu0 0.0
        %2293 = vmatpush2.msra.mxu0 0.0
        %2294 = vmatprep.subr.mxu0 0.0
        %2295 = vmatpush2.msra.mxu0 0.0
        %2296 = vmatprep.subr.mxu0 0.0
        %2297 = vmatpush2.msra.mxu0 0.0
        %2298 = vmatprep.subr.mxu0 0.0
        %2299 = vmatpush2.msra.mxu0 0.0
        %2300 = vmatprep.mubr.f32.mxu0 0.0
        %2301 = vmatmul.mubr.f32.gmra.mxu0 %v2234
        %v2302 = vpop.f32.mrf.mxu0
        %v2303 = vadd.f32 0.0, %v2302
        %v2304 = vpop.f32.mrf.mxu0
        %2305 = vdwg.mxu0
        %v2307 = vsel %vm1438, %v2080, 0
        %2309 = vmatprep.subr.mxu0 0.0
        %2310 = vmatpush1.msra.mxu0 0.0
        %2311 = vmatprep.subr.mxu0 0.0
        %2312 = vmatpush1.msra.mxu0 0.0
        %2313 = vmatprep.subr.mxu0 0.0
        %2314 = vmatpush1.msra.mxu0 0.0
        %2315 = vmatprep.subr.mxu0 0.0
        %2316 = vmatpush1.msra.mxu0 0.0
        %2317 = vmatprep.subr.mxu0 0.0
        %2318 = vmatpush1.msra.mxu0 0.0
        %2319 = vmatprep.subr.mxu0 0.0
        %2320 = vmatpush1.msra.mxu0 0.0
        %2321 = vmatprep.subr.mxu0 0.0
        %2322 = vmatpush1.msra.mxu0 0.0
        %2323 = vmatprep.subr.mxu0 0.0
        %2324 = vmatpush1.msra.mxu0 0.0
        %2325 = vmatprep.subr.mxu0 0.0
        %2326 = vmatpush1.msra.mxu0 0.0
        %2327 = vmatprep.subr.mxu0 0.0
        %2328 = vmatpush1.msra.mxu0 0.0
        %2329 = vmatprep.subr.mxu0 0.0
        %2330 = vmatpush1.msra.mxu0 0.0
        %2331 = vmatprep.subr.mxu0 0.0
        %2332 = vmatpush1.msra.mxu0 0.0
        %2333 = vmatprep.subr.mxu0 0.0
        %2334 = vmatpush1.msra.mxu0 0.0
        %2335 = vmatprep.subr.mxu0 0.0
        %2336 = vmatpush1.msra.mxu0 0.0
        %2337 = vmatprep.subr.mxu0 0.0
        %2338 = vmatpush1.msra.mxu0 0.0
        %2339 = vmatprep.subr.mxu0 0.0
        %2340 = vmatpush1.msra.mxu0 %v2086
        %2341 = vmatprep.subr.mxu0 0.0
        %2342 = vmatpush2.msra.mxu0 0.0
        %2343 = vmatprep.subr.mxu0 0.0
        %2344 = vmatpush2.msra.mxu0 0.0
        %2345 = vmatprep.subr.mxu0 0.0
        %2346 = vmatpush2.msra.mxu0 0.0
        %2347 = vmatprep.subr.mxu0 0.0
        %2348 = vmatpush2.msra.mxu0 0.0
        %2349 = vmatprep.subr.mxu0 0.0
        %2350 = vmatpush2.msra.mxu0 0.0
        %2351 = vmatprep.subr.mxu0 0.0
        %2352 = vmatpush2.msra.mxu0 0.0
        %2353 = vmatprep.subr.mxu0 0.0
        %2354 = vmatpush2.msra.mxu0 0.0
        %2355 = vmatprep.subr.mxu0 0.0
        %2356 = vmatpush2.msra.mxu0 0.0
        %2357 = vmatprep.subr.mxu0 0.0
        %2358 = vmatpush2.msra.mxu0 0.0
        %2359 = vmatprep.subr.mxu0 0.0
        %2360 = vmatpush2.msra.mxu0 0.0
        %2361 = vmatprep.subr.mxu0 0.0
        %2362 = vmatpush2.msra.mxu0 0.0
        %2363 = vmatprep.subr.mxu0 0.0
        %2364 = vmatpush2.msra.mxu0 0.0
        %2365 = vmatprep.subr.mxu0 0.0
        %2366 = vmatpush2.msra.mxu0 0.0
        %2367 = vmatprep.subr.mxu0 0.0
        %2368 = vmatpush2.msra.mxu0 0.0
        %2369 = vmatprep.subr.mxu0 0.0
        %2370 = vmatpush2.msra.mxu0 0.0
        %2371 = vmatprep.subr.mxu0 0.0
        %2372 = vmatpush2.msra.mxu0 0.0
        %2373 = vmatprep.mubr.f32.mxu0 0.0
        %2374 = vmatmul.mubr.f32.gmra.mxu0 %v2307
        %v2375 = vpop.f32.mrf.mxu0
        %v2376 = vadd.f32 0.0, %v2375
        %v2377 = vpop.f32.mrf.mxu0
        %2378 = vdwg.mxu0
        %v2379 = vsel %vm1099, %v2157, 0.0
        %v2380 = vsel %vm1099, %v2230, 0.0
        %v2381 = vadd.f32 %v2379, %v2380
        %v2382 = vsel %vm1099, %v2303, 0.0
        %v2383 = vadd.f32 %v2381, %v2382
        %v2384 = vsel %vm1099, %v2376, 0.0
        %v2385 = vadd.f32 %v2383, %v2384
        %v2386 = vadd.f32 %v2385, %v1098
        %2387 = vst.msk [vmem:[%s404] sm:$0xff] %vm1099, %v2386
        %s2388 = sand.u32 %s256, 1
        %s2389 = scalar_lea.sflag [#allocation5], %s2388
        %s2390 = sand.u32 %s256, 1
        %s2391 = smul.addr %s2390, 8
        %s2392 = scalar_lea.vmem [#allocation4], %s2391
        %s2393 = sand.u32 %s284, 1
        %s2394 = scalar_lea.sflag [#allocation7], %s2393
        %s2395 = sand.u32 %s284, 1
        %s2396 = smul.addr %s2395, 32
        %s2397 = scalar_lea.vmem [#allocation6], %s2396
        // Predicated region
        $region61: #{tpu_custom_call.1} parent=55 // pred_check
          %p2398 = pneg %p266
        $region62: #{tpu_custom_call.1} parent=55 // pred_check_branch
          %2400 = sbr.rel (%p2398) target = $region64
        $region63: #{tpu_custom_call.1} parent=55 // pred_region
          %s2402 = ssub.s32 128, 128
          %2403 = vsyncadd %s2389, %s2402
          %s2404 = sadd.s32 %s33, %s32
          %s2405 = smul.addr %s2404, 128
          %s2406 = scalar_lea.hbm %s9, %s2405
          %s2408 = sshll.u32 %s2392, 4
          %s2409 = int_to_ptr.vmem [resolvable:$true] %s2408
          %2411 = dma.vmem_to_hbm [thread:$0]  %s2409, 128, %s2406, %s2389
        $region64: #{tpu_custom_call.1} parent=55 // pred_fallthru
          _
        // Predicated region
        $region65: #{tpu_custom_call.1} parent=55 // pred_check
          %p2412 = pneg %p294
        $region66: #{tpu_custom_call.1} parent=55 // pred_check_branch
          %2414 = sbr.rel (%p2412) target = $region68
        $region67: #{tpu_custom_call.1} parent=55 // pred_region
          %s2416 = ssub.s32 512, 512
          %2417 = vsyncadd %s2394, %s2416
          %s2418 = smul.addr %s32, 4
          %s2419 = sadd.s32 %s33, %s2418
          %s2420 = smul.addr %s2419, 128
          %s2421 = scalar_lea.hbm %s10, %s2420
          %s2422 = sshll.u32 %s2397, 4
          %s2423 = int_to_ptr.vmem [resolvable:$true] %s2422
          %2428 = dma.vmem_to_hbm [thread:$0]  %s2423, 512, %s2421, %s2394, 128, 128, 8
        $region68: #{tpu_custom_call.1} parent=55 // pred_fallthru
          _
      $region56: #{tpu_custom_call.1} parent=5 // pred_fallthru
        _
      %p2429 = scmp.le.s32.totalorder 2, %s23
      // Predicated region
      $region69: #{tpu_custom_call.1} parent=5 // pred_check
        %p2430 = pneg %p2429
      $region70: #{tpu_custom_call.1} parent=5 // pred_check_branch
        %2432 = sbr.rel (%p2430) target = $region72
      $region71: #{tpu_custom_call.1} parent=5 // pred_region
        %s2433 = ssub.s32 %s23, 2
        // Predicated region
        $region73: #{tpu_custom_call.1} parent=71 // pred_check
          %p2434 = pneg %p272
        $region74: #{tpu_custom_call.1} parent=71 // pred_check_branch
          %2436 = sbr.rel (%p2434) target = $region76
        $region75: #{tpu_custom_call.1} parent=71 // pred_region
          %s2437 = sand.u32 %s257, 1
          %s2438 = scalar_lea.sflag [#allocation5], %s2437
          %s2439 = sand.u32 %s257, 1
          %s2440 = smul.addr %s2439, 8
          %s2441 = scalar_lea.vmem [#allocation4], %s2440
          %2442 = dma.done %s2438, 128
        $region76: #{tpu_custom_call.1} parent=71 // pred_fallthru
          _
        // Predicated region
        $region77: #{tpu_custom_call.1} parent=71 // pred_check
          %p2443 = pneg %p300
        $region78: #{tpu_custom_call.1} parent=71 // pred_check_branch
          %2445 = sbr.rel (%p2443) target = $region80
        $region79: #{tpu_custom_call.1} parent=71 // pred_region
          %s2446 = sand.u32 %s285, 1
          %s2447 = scalar_lea.sflag [#allocation7], %s2446
          %s2448 = sand.u32 %s285, 1
          %s2449 = smul.addr %s2448, 32
          %s2450 = scalar_lea.vmem [#allocation6], %s2449
          %2451 = dma.done %s2447, 512
        $region80: #{tpu_custom_call.1} parent=71 // pred_fallthru
          _
      $region72: #{tpu_custom_call.1} parent=5 // pred_fallthru
        _
    $region6: #{tpu_custom_call.1} parent=1 // loop_footer
      %s27 = sadd.s32 1, %s23
    $region7: #{tpu_custom_call.1} parent=1 // loop_footer_branch
      %22 = sbr.rel target = $region3
    $region8: #{tpu_custom_call.1} parent=1 // loop_exit
      _
    %2452 = vsyncpa [#allocation5], 1
    %s2453 = scalar_lea.sflag [#allocation5], 1
    %2454 = vsyncpa %s2453, 1
    %2455 = vsyncpa [#allocation7], 1
    %s2456 = scalar_lea.sflag [#allocation7], 1
    %2457 = vsyncpa %s2456, 1

</llo_original>
